<compile_context>
chip_gen: v7x
topology: tpu7x:2x2x1
jax: 0.10.0
libtpu: 0.0.40
codegen_flags: <defaults>
</compile_context>

<pallas_src>
import functools

import jax
import jax.numpy as jnp
from jax.experimental import pallas as pl
from jax.experimental.pallas import tpu as pltpu

BN_EPS = 1e-5
_NEG_BIG = -1e30  # effectively -inf for the masked softmax, avoids inf arithmetic


def _round_up(n, m):
    return ((n + m - 1) // m) * m


def dnn_kernel(
    x_ref, w1_ref, w2_ref, w3_ref, vec_ref, b3_ref,
    z1_ref, z2_ref, z3_ref, y_ref, s1_ref, s2_ref,
    *, out_valid,
):
    x = x_ref[...]

    # packed per-feature vectors: rows = [b1, sc1, sh1, b2, sc2, sh2, 0, 0]
    b1 = vec_ref[0:1, :]
    sc1 = vec_ref[1:2, :]
    sh1 = vec_ref[2:3, :]
    b2 = vec_ref[3:4, :]
    sc2 = vec_ref[4:5, :]
    sh2 = vec_ref[5:6, :]

    # ---- layer 1: Linear -> folded BN -> ReLU ----
    z1 = jnp.dot(x, w1_ref[...], preferred_element_type=jnp.float32) + b1
    z1_ref[...] = z1
    s1 = jnp.maximum(z1 * sc1 + sh1, 0.0)
    s1_ref[...] = s1

    # ---- layer 2: Linear -> folded BN -> ReLU ----
    z2 = jnp.dot(s1, w2_ref[...], preferred_element_type=jnp.float32) + b2
    z2_ref[...] = z2
    s2 = jnp.maximum(z2 * sc2 + sh2, 0.0)
    s2_ref[...] = s2

    # ---- layer 3: Linear -> log_softmax (masked over padded lanes) ----
    z3 = jnp.dot(s2, w3_ref[...], preferred_element_type=jnp.float32) + b3_ref[...]
    z3_ref[...] = z3

    if out_valid < z3.shape[-1]:
        lane = jax.lax.broadcasted_iota(jnp.int32, z3.shape, dimension=1)
        zm = jnp.where(lane < out_valid, z3, _NEG_BIG)
    else:
        zm = z3
    m = jnp.max(zm, axis=-1, keepdims=True)
    lse = jnp.log(jnp.sum(jnp.exp(zm - m), axis=-1, keepdims=True)) + m
    y_ref[...] = z3 - lse


@functools.partial(jax.jit, static_argnames=("tile_n",))
def dnn_forward(x, params, *, tile_n=512):
    """x: (N, C_in) float32. params: dict of pre-transposed weights / BN stats."""
    N, C = x.shape
    H = params["w1"].shape[1]
    O = params["w3"].shape[1]

    # ---- padded (lane-dense) sizes ----
    Cp = _round_up(C, 128)
    Hp = _round_up(H, 128)
    Op = _round_up(O, 128)
    tile_n = max(8, min(_round_up(tile_n, 8), _round_up(N, 8)))
    Np = _round_up(N, tile_n)
    grid_n = Np // tile_n

    def pad2(a, rows, cols):
        pr, pc = rows - a.shape[0], cols - a.shape[1]
        return jnp.pad(a, ((0, pr), (0, pc))) if (pr or pc) else a

    # ---- fold BN into scale/shift ----
    sc1 = params["g1"] * jax.lax.rsqrt(params["rv1"] + BN_EPS)
    sh1 = params["be1"] - params["rm1"] * sc1
    sc2 = params["g2"] * jax.lax.rsqrt(params["rv2"] + BN_EPS)
    sh2 = params["be2"] - params["rm2"] * sc2

    # pack the six (1, H) vectors into one (8, Hp) slab
    vecs = jnp.concatenate(
        [params["b1"], sc1, sh1, params["b2"], sc2, sh2], axis=0)
    vecs_p = pad2(vecs, 8, Hp)

    x_p = pad2(x, Np, Cp)
    w1_p = pad2(params["w1"], Cp, Hp)
    w2_p = pad2(params["w2"], Hp, Hp)
    w3_p = pad2(params["w3"], Hp, Op)
    b3_p = pad2(params["b3"], 1, Op)

    inputs = (x_p, w1_p, w2_p, w3_p, vecs_p, b3_p)

    # ---- BlockSpecs: tile activations over rows, keep params VMEM-resident ----
    def row_spec(cols):
        return pl.BlockSpec((tile_n, cols), lambda i: (i, 0))

    def resident_spec(a):
        return pl.BlockSpec(a.shape, lambda i: (0, 0))

    in_specs = [row_spec(Cp)] + [resident_spec(a) for a in inputs[1:]]

    out_shapes = (
        jax.ShapeDtypeStruct((Np, Hp), jnp.float32),  # z1
        jax.ShapeDtypeStruct((Np, Hp), jnp.float32),  # z2
        jax.ShapeDtypeStruct((Np, Op), jnp.float32),  # z3
        jax.ShapeDtypeStruct((Np, Op), jnp.float32),  # hat_Y
        jax.ShapeDtypeStruct((Np, Hp), jnp.float32),  # S1
        jax.ShapeDtypeStruct((Np, Hp), jnp.float32),  # S2
    )
    out_specs = tuple(row_spec(o.shape[1]) for o in out_shapes)

    flops = 2 * N * (C * H + H * H + H * O)
    bytes_acc = 4 * (N * C + C * H + 2 * H * H + H * O + 7 * H + 2 * O
                     + N * (4 * H + 2 * O))
    cost = pl.CostEstimate(flops=flops, transcendentals=N * O,
                           bytes_accessed=bytes_acc)

    z1p, z2p, z3p, yp, s1p, s2p = pl.pallas_call(
        functools.partial(dnn_kernel, out_valid=O),
        grid=(grid_n,),
        in_specs=in_specs,
        out_specs=out_specs,
        out_shape=out_shapes,
        compiler_params=pltpu.CompilerParams(
            dimension_semantics=("parallel",),
        ),
        cost_estimate=cost,
    )(*inputs)

    # slice padded rows / lanes back off (fused into the jit)
    z1 = z1p[:N, :H]
    z2 = z2p[:N, :H]
    z3 = z3p[:N, :O]
    hat_y = yp[:N, :O]
    s1 = s1p[:N, :H]
    s2 = s2p[:N, :H]
    return [z1, z2, z3], hat_y, [s1, s2]


def init_params(key, in_channels, hidden_channels, out_channels):
    ks = jax.random.split(key, 6)

    def linear(kw, kb, fan_in, fan_out):
        bound = 1.0 / jnp.sqrt(fan_in)
        # stored pre-transposed: (fan_in, fan_out) so kernel does x @ W
        w = jax.random.uniform(kw, (fan_in, fan_out), jnp.float32, -bound, bound)
        b = jax.random.uniform(kb, (1, fan_out), jnp.float32, -bound, bound)
        return w, b

    w1, b1 = linear(ks[0], ks[1], in_channels, hidden_channels)
    w2, b2 = linear(ks[2], ks[3], hidden_channels, hidden_channels)
    w3, b3 = linear(ks[4], ks[5], hidden_channels, out_channels)

    def bn(h):
        return (
            jnp.ones((1, h), jnp.float32),    # gamma
            jnp.zeros((1, h), jnp.float32),   # beta
            jnp.zeros((1, h), jnp.float32),   # running_mean
            jnp.ones((1, h), jnp.float32),    # running_var
        )

    g1, be1, rm1, rv1 = bn(hidden_channels)
    g2, be2, rm2, rv2 = bn(hidden_channels)

    return dict(
        w1=w1, b1=b1, g1=g1, be1=be1, rm1=rm1, rv1=rv1,
        w2=w2, b2=b2, g2=g2, be2=be2, rm2=rm2, rv2=rv2,
        w3=w3, b3=b3,
    )


if __name__ == "__main__":
    N, C_IN, C_HID, C_OUT = 256, 16, 32, 8

    key = jax.random.PRNGKey(0)
    k_x, k_p = jax.random.split(key)
    x = jax.random.normal(k_x, (N, C_IN), jnp.float32)
    params = init_params(k_p, C_IN, C_HID, C_OUT)

    # tile_n=128 -> grid=(2,), exercises the pipelined / parallel grid path.
    z, hat_y, s = dnn_forward(x, params, tile_n=128)
    jax.block_until_ready(hat_y)

    # lightweight sanity check against a pure-JAX reference (eval-mode module)
    def ref(x, p):
        z1 = x @ p["w1"] + p["b1"]
        s1 = jnp.maximum((z1 - p["rm1"]) / jnp.sqrt(p["rv1"] + BN_EPS) * p["g1"] + p["be1"], 0.0)
        z2 = s1 @ p["w2"] + p["b2"]
        s2 = jnp.maximum((z2 - p["rm2"]) / jnp.sqrt(p["rv2"] + BN_EPS) * p["g2"] + p["be2"], 0.0)
        z3 = s2 @ p["w3"] + p["b3"]
        return z1, s1, z2, s2, z3, jax.nn.log_softmax(z3, axis=-1)

    rz1, rs1, rz2, rs2, rz3, ry = ref(x, params)
    assert jnp.allclose(z[0], rz1, atol=1e-4, rtol=1e-4)
    assert jnp.allclose(s[0], rs1, atol=1e-4, rtol=1e-4)
    assert jnp.allclose(z[1], rz2, atol=1e-4, rtol=1e-4)
    assert jnp.allclose(s[1], rs2, atol=1e-4, rtol=1e-4)
    assert jnp.allclose(z[2], rz3, atol=1e-4, rtol=1e-4)
    assert jnp.allclose(hat_y, ry, atol=1e-4, rtol=1e-4)
    assert z[0].shape == (N, C_HID) and z[2].shape == (N, C_OUT)
    assert s[0].shape == (N, C_HID) and hat_y.shape == (N, C_OUT)

    print("KERNEL_OK")
</pallas_src>

<mosaic_0001>
module attributes {stable_mosaic.version = 11 : i64} {
  func.func @dnn_kernel(%arg0: i32, %arg1: memref<128x128xf32, #tpu.memory_space<vmem>>, %arg2: memref<128x128xf32, #tpu.memory_space<vmem>>, %arg3: memref<128x128xf32, #tpu.memory_space<vmem>>, %arg4: memref<128x128xf32, #tpu.memory_space<vmem>>, %arg5: memref<8x128xf32, #tpu.memory_space<vmem>>, %arg6: memref<1x128xf32, #tpu.memory_space<vmem>>, %arg7: memref<128x128xf32, #tpu.memory_space<vmem>>, %arg8: memref<128x128xf32, #tpu.memory_space<vmem>>, %arg9: memref<128x128xf32, #tpu.memory_space<vmem>>, %arg10: memref<128x128xf32, #tpu.memory_space<vmem>>, %arg11: memref<128x128xf32, #tpu.memory_space<vmem>>, %arg12: memref<128x128xf32, #tpu.memory_space<vmem>>) attributes {dimension_semantics = [#tpu.dimension_semantics<parallel>], iteration_bounds = array<i64: 2>, scalar_prefetch = 0 : i64, scratch_operands = 0 : i64, tpu.core_type = #tpu.core_type<tc>, window_params = [{transform_indices = @transform_0, window_bounds = array<i64: 128, 128>}, {pipeline_mode = #tpu.pipeline_mode<synchronous>, transform_indices = @transform_1, window_bounds = array<i64: 128, 128>}, {pipeline_mode = #tpu.pipeline_mode<synchronous>, transform_indices = @transform_2, window_bounds = array<i64: 128, 128>}, {pipeline_mode = #tpu.pipeline_mode<synchronous>, transform_indices = @transform_3, window_bounds = array<i64: 128, 128>}, {pipeline_mode = #tpu.pipeline_mode<synchronous>, transform_indices = @transform_4, window_bounds = array<i64: 8, 128>}, {pipeline_mode = #tpu.pipeline_mode<synchronous>, transform_indices = @transform_5, window_bounds = array<i64: 1, 128>}, {transform_indices = @transform_6, window_bounds = array<i64: 128, 128>}, {transform_indices = @transform_7, window_bounds = array<i64: 128, 128>}, {transform_indices = @transform_8, window_bounds = array<i64: 128, 128>}, {transform_indices = @transform_9, window_bounds = array<i64: 128, 128>}, {transform_indices = @transform_10, window_bounds = array<i64: 128, 128>}, {transform_indices = @transform_11, window_bounds = array<i64: 128, 128>}]} {
    %c0 = arith.constant 0 : index
    %c0_0 = arith.constant 0 : index
    %0 = vector.load %arg1[%c0, %c0_0] : memref<128x128xf32, #tpu.memory_space<vmem>>, vector<128x128xf32>
    %c0_1 = arith.constant 0 : index
    %c0_2 = arith.constant 0 : index
    %1 = vector.load %arg5[%c0_1, %c0_2] : memref<8x128xf32, #tpu.memory_space<vmem>>, vector<1x128xf32>
    %c1 = arith.constant 1 : index
    %c0_3 = arith.constant 0 : index
    %2 = vector.load %arg5[%c1, %c0_3] : memref<8x128xf32, #tpu.memory_space<vmem>>, vector<1x128xf32>
    %c2 = arith.constant 2 : index
    %c0_4 = arith.constant 0 : index
    %3 = vector.load %arg5[%c2, %c0_4] : memref<8x128xf32, #tpu.memory_space<vmem>>, vector<1x128xf32>
    %c3 = arith.constant 3 : index
    %c0_5 = arith.constant 0 : index
    %4 = vector.load %arg5[%c3, %c0_5] : memref<8x128xf32, #tpu.memory_space<vmem>>, vector<1x128xf32>
    %c4 = arith.constant 4 : index
    %c0_6 = arith.constant 0 : index
    %5 = vector.load %arg5[%c4, %c0_6] : memref<8x128xf32, #tpu.memory_space<vmem>>, vector<1x128xf32>
    %c5 = arith.constant 5 : index
    %c0_7 = arith.constant 0 : index
    %6 = vector.load %arg5[%c5, %c0_7] : memref<8x128xf32, #tpu.memory_space<vmem>>, vector<1x128xf32>
    %c0_8 = arith.constant 0 : index
    %c0_9 = arith.constant 0 : index
    %7 = vector.load %arg2[%c0_8, %c0_9] : memref<128x128xf32, #tpu.memory_space<vmem>>, vector<128x128xf32>
    %cst = arith.constant dense<0.000000e+00> : vector<128x128xf32>
    %8 = tpu.matmul %0, %7, %cst {dimension_numbers = #tpu.dot_dimension_numbers<[1], [0], [0], [1], [0, 0, 1, 1], [], []>} : vector<128x128xf32>, vector<128x128xf32>, vector<128x128xf32> -> vector<128x128xf32>
    %9 = vector.broadcast %1 : vector<1x128xf32> to vector<128x128xf32>
    %10 = arith.addf %8, %9 : vector<128x128xf32>
    %c0_10 = arith.constant 0 : index
    %c0_11 = arith.constant 0 : index
    %11 = vector.load %arg7[%c0_10, %c0_11] : memref<128x128xf32, #tpu.memory_space<vmem>>, vector<128x128xf32>
    tpu.vector_store %arg7[%c0_10, %c0_11], %10 {strides = array<i32>} : memref<128x128xf32, #tpu.memory_space<vmem>>, vector<128x128xf32>,
    %12 = vector.broadcast %2 : vector<1x128xf32> to vector<128x128xf32>
    %13 = arith.mulf %10, %12 : vector<128x128xf32>
    %14 = vector.broadcast %3 : vector<1x128xf32> to vector<128x128xf32>
    %15 = arith.addf %13, %14 : vector<128x128xf32>
    %cst_12 = arith.constant 0.000000e+00 : f32
    %16 = vector.broadcast %cst_12 : f32 to vector<128x128xf32>
    %17 = arith.maximumf %15, %16 : vector<128x128xf32>
    %c0_13 = arith.constant 0 : index
    %c0_14 = arith.constant 0 : index
    %18 = vector.load %arg11[%c0_13, %c0_14] : memref<128x128xf32, #tpu.memory_space<vmem>>, vector<128x128xf32>
    tpu.vector_store %arg11[%c0_13, %c0_14], %17 {strides = array<i32>} : memref<128x128xf32, #tpu.memory_space<vmem>>, vector<128x128xf32>,
    %c0_15 = arith.constant 0 : index
    %c0_16 = arith.constant 0 : index
    %19 = vector.load %arg3[%c0_15, %c0_16] : memref<128x128xf32, #tpu.memory_space<vmem>>, vector<128x128xf32>
    %cst_17 = arith.constant dense<0.000000e+00> : vector<128x128xf32>
    %20 = tpu.matmul %17, %19, %cst_17 {dimension_numbers = #tpu.dot_dimension_numbers<[1], [0], [0], [1], [0, 0, 1, 1], [], []>} : vector<128x128xf32>, vector<128x128xf32>, vector<128x128xf32> -> vector<128x128xf32>
    %21 = vector.broadcast %4 : vector<1x128xf32> to vector<128x128xf32>
    %22 = arith.addf %20, %21 : vector<128x128xf32>
    %c0_18 = arith.constant 0 : index
    %c0_19 = arith.constant 0 : index
    %23 = vector.load %arg8[%c0_18, %c0_19] : memref<128x128xf32, #tpu.memory_space<vmem>>, vector<128x128xf32>
    tpu.vector_store %arg8[%c0_18, %c0_19], %22 {strides = array<i32>} : memref<128x128xf32, #tpu.memory_space<vmem>>, vector<128x128xf32>,
    %24 = vector.broadcast %5 : vector<1x128xf32> to vector<128x128xf32>
    %25 = arith.mulf %22, %24 : vector<128x128xf32>
    %26 = vector.broadcast %6 : vector<1x128xf32> to vector<128x128xf32>
    %27 = arith.addf %25, %26 : vector<128x128xf32>
    %cst_20 = arith.constant 0.000000e+00 : f32
    %28 = vector.broadcast %cst_20 : f32 to vector<128x128xf32>
    %29 = arith.maximumf %27, %28 : vector<128x128xf32>
    %c0_21 = arith.constant 0 : index
    %c0_22 = arith.constant 0 : index
    %30 = vector.load %arg12[%c0_21, %c0_22] : memref<128x128xf32, #tpu.memory_space<vmem>>, vector<128x128xf32>
    tpu.vector_store %arg12[%c0_21, %c0_22], %29 {strides = array<i32>} : memref<128x128xf32, #tpu.memory_space<vmem>>, vector<128x128xf32>,
    %c0_23 = arith.constant 0 : index
    %c0_24 = arith.constant 0 : index
    %31 = vector.load %arg4[%c0_23, %c0_24] : memref<128x128xf32, #tpu.memory_space<vmem>>, vector<128x128xf32>
    %cst_25 = arith.constant dense<0.000000e+00> : vector<128x128xf32>
    %32 = tpu.matmul %29, %31, %cst_25 {dimension_numbers = #tpu.dot_dimension_numbers<[1], [0], [0], [1], [0, 0, 1, 1], [], []>} : vector<128x128xf32>, vector<128x128xf32>, vector<128x128xf32> -> vector<128x128xf32>
    %c0_26 = arith.constant 0 : index
    %c0_27 = arith.constant 0 : index
    %33 = vector.load %arg6[%c0_26, %c0_27] : memref<1x128xf32, #tpu.memory_space<vmem>>, vector<1x128xf32>
    %34 = vector.broadcast %33 : vector<1x128xf32> to vector<128x128xf32>
    %35 = arith.addf %32, %34 : vector<128x128xf32>
    %c0_28 = arith.constant 0 : index
    %c0_29 = arith.constant 0 : index
    %36 = vector.load %arg9[%c0_28, %c0_29] : memref<128x128xf32, #tpu.memory_space<vmem>>, vector<128x128xf32>
    tpu.vector_store %arg9[%c0_28, %c0_29], %35 {strides = array<i32>} : memref<128x128xf32, #tpu.memory_space<vmem>>, vector<128x128xf32>,
    %37 = tpu.iota {dimensions = array<i32: 1>} : vector<128x128xi32>
    %c8_i32 = arith.constant 8 : i32
    %38 = vector.broadcast %c8_i32 : i32 to vector<128x128xi32>
    %39 = arith.cmpi slt, %37, %38 : vector<128x128xi32>
    %cst_30 = arith.constant -1.000000e+30 : f32
    %40 = vector.broadcast %cst_30 : f32 to vector<128x128xf32>
    %41 = arith.select %39, %35, %40 : vector<128x128xi1>, vector<128x128xf32>
    %cst_31 = arith.constant dense<0xFF800000> : vector<128xf32>
    %42 = vector.multi_reduction <maximumf>, %41, %cst_31 [1] : vector<128x128xf32> to vector<128xf32>
    %43 = vector.shape_cast %42 : vector<128xf32> to vector<128x1xf32>
    %44 = vector.broadcast %43 : vector<128x1xf32> to vector<128x128xf32>
    %45 = arith.subf %41, %44 : vector<128x128xf32>
    %46 = math.exp %45 : vector<128x128xf32>
    %cst_32 = arith.constant dense<0.000000e+00> : vector<128xf32>
    %47 = vector.multi_reduction <add>, %46, %cst_32 [1] : vector<128x128xf32> to vector<128xf32>
    %48 = vector.shape_cast %47 : vector<128xf32> to vector<128x1xf32>
    %49 = math.log %48 : vector<128x1xf32>
    %50 = arith.addf %49, %43 : vector<128x1xf32>
    %51 = vector.broadcast %50 : vector<128x1xf32> to vector<128x128xf32>
    %52 = arith.subf %35, %51 : vector<128x128xf32>
    %c0_33 = arith.constant 0 : index
    %c0_34 = arith.constant 0 : index
    %53 = vector.load %arg10[%c0_33, %c0_34] : memref<128x128xf32, #tpu.memory_space<vmem>>, vector<128x128xf32>
    tpu.vector_store %arg10[%c0_33, %c0_34], %52 {strides = array<i32>} : memref<128x128xf32, #tpu.memory_space<vmem>>, vector<128x128xf32>,
    return
  }
  func.func @transform_0(%arg0: i32) -> (i32, i32) {
    %c0_i32 = arith.constant 0 : i32
    %c0_i32_0 = arith.constant 0 : i32
    return %arg0, %c0_i32 : i32, i32
  }
  func.func @transform_1(%arg0: i32) -> (i32, i32) {
    %c0_i32 = arith.constant 0 : i32
    %c0_i32_0 = arith.constant 0 : i32
    %c0_i32_1 = arith.constant 0 : i32
    return %c0_i32, %c0_i32_0 : i32, i32
  }
  func.func @transform_2(%arg0: i32) -> (i32, i32) {
    %c0_i32 = arith.constant 0 : i32
    %c0_i32_0 = arith.constant 0 : i32
    %c0_i32_1 = arith.constant 0 : i32
    return %c0_i32, %c0_i32_0 : i32, i32
  }
  func.func @transform_3(%arg0: i32) -> (i32, i32) {
    %c0_i32 = arith.constant 0 : i32
    %c0_i32_0 = arith.constant 0 : i32
    %c0_i32_1 = arith.constant 0 : i32
    return %c0_i32, %c0_i32_0 : i32, i32
  }
  func.func @transform_4(%arg0: i32) -> (i32, i32) {
    %c0_i32 = arith.constant 0 : i32
    %c0_i32_0 = arith.constant 0 : i32
    %c0_i32_1 = arith.constant 0 : i32
    return %c0_i32, %c0_i32_0 : i32, i32
  }
  func.func @transform_5(%arg0: i32) -> (i32, i32) {
    %c0_i32 = arith.constant 0 : i32
    %c0_i32_0 = arith.constant 0 : i32
    %c0_i32_1 = arith.constant 0 : i32
    return %c0_i32, %c0_i32_0 : i32, i32
  }
  func.func @transform_6(%arg0: i32) -> (i32, i32) {
    %c0_i32 = arith.constant 0 : i32
    %c0_i32_0 = arith.constant 0 : i32
    return %arg0, %c0_i32 : i32, i32
  }
  func.func @transform_7(%arg0: i32) -> (i32, i32) {
    %c0_i32 = arith.constant 0 : i32
    %c0_i32_0 = arith.constant 0 : i32
    return %arg0, %c0_i32 : i32, i32
  }
  func.func @transform_8(%arg0: i32) -> (i32, i32) {
    %c0_i32 = arith.constant 0 : i32
    %c0_i32_0 = arith.constant 0 : i32
    return %arg0, %c0_i32 : i32, i32
  }
  func.func @transform_9(%arg0: i32) -> (i32, i32) {
    %c0_i32 = arith.constant 0 : i32
    %c0_i32_0 = arith.constant 0 : i32
    return %arg0, %c0_i32 : i32, i32
  }
  func.func @transform_10(%arg0: i32) -> (i32, i32) {
    %c0_i32 = arith.constant 0 : i32
    %c0_i32_0 = arith.constant 0 : i32
    return %arg0, %c0_i32 : i32, i32
  }
  func.func @transform_11(%arg0: i32) -> (i32, i32) {
    %c0_i32 = arith.constant 0 : i32
    %c0_i32_0 = arith.constant 0 : i32
    return %arg0, %c0_i32 : i32, i32
  }
}

</mosaic_0001>

<llo_original>
// kernel: dnn_forward.1
$region0: #{dnn_forward.1}
  #allocation0 [shape = 'u32[]', space=smem, size = 0x4, offset = 0x4, fixed_abs, tag = 'smem constant byte address 0x4 - core index']
  #allocation1 [shape = 'u32[144,128]{1,0:T(1,128)}', space=vmem, size = 0x12000, scoped, tag = 'internal scratch']
  %s0 = inlined_call_operand.vmem [shape: f32[256,128], index: 0, kind: input, shape index: {}]
  %s1 = inlined_call_operand.vmem [shape: f32[128,128], index: 1, kind: input, shape index: {}]
  %s2 = inlined_call_operand.vmem [shape: f32[128,128], index: 2, kind: input, shape index: {}]
  %s3 = inlined_call_operand.vmem [shape: f32[128,128], index: 3, kind: input, shape index: {}]
  %s4 = inlined_call_operand.vmem [shape: f32[8,128], index: 4, kind: input, shape index: {}]
  %s5 = inlined_call_operand.vmem [shape: f32[1,128], index: 5, kind: input, shape index: {}]
  %s6 = inlined_call_operand.vmem [shape: f32[256,128], index: 6, kind: output, shape index: {0}]
  %s7 = inlined_call_operand.vmem [shape: f32[256,128], index: 7, kind: output, shape index: {1}]
  %s8 = inlined_call_operand.vmem [shape: f32[256,128], index: 8, kind: output, shape index: {2}]
  %s9 = inlined_call_operand.vmem [shape: f32[256,128], index: 9, kind: output, shape index: {3}]
  %s10 = inlined_call_operand.vmem [shape: f32[256,128], index: 10, kind: output, shape index: {4}]
  %s11 = inlined_call_operand.vmem [shape: f32[256,128], index: 11, kind: output, shape index: {5}]
  %12 = xla_tuple %s6, %s7, %s8, %s9, %s10, %s11
  %s13 = sld [smem:[#allocation0]]
  $region97: #{dnn_forward.1} parent=0
    _
  %s15 = ssub.s32 1, %s13
  %s16 = scalar_select 0, %s15, %s13
  loop: start=0, step=1, limit=4
  $region2: #{dnn_forward.1} parent=0 // loop_pre_header
    _
  $region3: #{dnn_forward.1} parent=0 // loop_header
    %s18 = sphi 0, %s22
    %p19 = scmp.ge.s32.totalorder %s18, 4
    %s28 = sphi 0, %s30
    %s31 = sphi 0, %s28
    %s32 = sphi 0, %s31
    %s48 = sphi 0, %s32
    %s52 = sphi 0, %s52
    %s54 = sphi 0, %s52
    %s55 = sphi 0, %s54
    %s69 = sphi 0, %s55
    %s73 = sphi 0, %s73
    %s75 = sphi 0, %s73
    %s76 = sphi 0, %s75
    %s90 = sphi 0, %s76
    %s94 = sphi 0, %s94
    %s96 = sphi 0, %s94
    %s97 = sphi 0, %s96
    %s111 = sphi 0, %s97
    %s115 = sphi 0, %s115
    %s117 = sphi 0, %s115
    %s118 = sphi 0, %s117
    %s132 = sphi 0, %s118
    %s136 = sphi 0, %s136
    %s138 = sphi 0, %s136
    %s139 = sphi 0, %s138
    %s153 = sphi 0, %s139
    %s159 = sphi 0, %s161
    %s162 = sphi 0, %s159
    %s163 = sphi 0, %s162
    %s179 = sphi 0, %s163
    %s185 = sphi 0, %s187
    %s188 = sphi 0, %s185
    %s189 = sphi 0, %s188
    %s205 = sphi 0, %s189
    %s211 = sphi 0, %s213
    %s214 = sphi 0, %s211
    %s215 = sphi 0, %s214
    %s231 = sphi 0, %s215
    %s237 = sphi 0, %s239
    %s240 = sphi 0, %s237
    %s241 = sphi 0, %s240
    %s257 = sphi 0, %s241
    %s263 = sphi 0, %s265
    %s266 = sphi 0, %s263
    %s267 = sphi 0, %s266
    %s283 = sphi 0, %s267
    %s289 = sphi 0, %s291
    %s292 = sphi 0, %s289
    %s293 = sphi 0, %s292
    %s309 = sphi 0, %s293
  $region4: #{dnn_forward.1} parent=0 // loop_header_branch
    %21 = sbr.rel (%p19) target = $region8
  $region5: #{dnn_forward.1} parent=0 // loop_body
    %s23 = ssub.s32 %s18, 1
    %s24 = ssub.s32 %s18, 2
    %s25 = sadd.s32 %s18, 1
    %s26 = ssub.s32 %s18, %s25
    %p27 = scmp.eq.s32.totalorder %s26, 0
    %s29 = sadd.s32 %s28, 1
    %s30 = scalar_select %p27, %s28, %s29
    %p33 = pneg %p27
    %p34 = scmp.eq.s32.totalorder %s18, 1
    %p35 = por %p33, %p34
    %p36 = scmp.ne.s32.totalorder %s28, %s31
    %p37 = scmp.eq.s32.totalorder %s18, 0
    %p38 = por %p36, %p37
    %p39 = scmp.ne.s32.totalorder %s28, %s31
    %p40 = scmp.eq.s32.totalorder %s23, 1
    %p41 = por %p39, %p40
    %p42 = scmp.ne.s32.totalorder %s31, %s32
    %p43 = scmp.eq.s32.totalorder %s23, 0
    %p44 = por %p42, %p43
    %p45 = scmp.ne.s32.totalorder %s31, %s32
    %p46 = scmp.eq.s32.totalorder %s24, 1
    %p47 = por %p45, %p46
    %p49 = scmp.ne.s32.totalorder %s32, %s48
    %p50 = scmp.eq.s32.totalorder %s24, 0
    %p51 = por %p49, %p50
    %s53 = sadd.s32 %s52, 1
    %p56 = scmp.eq.s32.totalorder %s18, 1
    %p57 = scmp.ne.s32.totalorder %s52, %s54
    %p58 = scmp.eq.s32.totalorder %s18, 0
    %p59 = por %p57, %p58
    %p60 = scmp.ne.s32.totalorder %s52, %s54
    %p61 = scmp.eq.s32.totalorder %s23, 1
    %p62 = por %p60, %p61
    %p63 = scmp.ne.s32.totalorder %s54, %s55
    %p64 = scmp.eq.s32.totalorder %s23, 0
    %p65 = por %p63, %p64
    %p66 = scmp.ne.s32.totalorder %s54, %s55
    %p67 = scmp.eq.s32.totalorder %s24, 1
    %p68 = por %p66, %p67
    %p70 = scmp.ne.s32.totalorder %s55, %s69
    %p71 = scmp.eq.s32.totalorder %s24, 0
    %p72 = por %p70, %p71
    %s74 = sadd.s32 %s73, 1
    %p77 = scmp.eq.s32.totalorder %s18, 1
    %p78 = scmp.ne.s32.totalorder %s73, %s75
    %p79 = scmp.eq.s32.totalorder %s18, 0
    %p80 = por %p78, %p79
    %p81 = scmp.ne.s32.totalorder %s73, %s75
    %p82 = scmp.eq.s32.totalorder %s23, 1
    %p83 = por %p81, %p82
    %p84 = scmp.ne.s32.totalorder %s75, %s76
    %p85 = scmp.eq.s32.totalorder %s23, 0
    %p86 = por %p84, %p85
    %p87 = scmp.ne.s32.totalorder %s75, %s76
    %p88 = scmp.eq.s32.totalorder %s24, 1
    %p89 = por %p87, %p88
    %p91 = scmp.ne.s32.totalorder %s76, %s90
    %p92 = scmp.eq.s32.totalorder %s24, 0
    %p93 = por %p91, %p92
    %s95 = sadd.s32 %s94, 1
    %p98 = scmp.eq.s32.totalorder %s18, 1
    %p99 = scmp.ne.s32.totalorder %s94, %s96
    %p100 = scmp.eq.s32.totalorder %s18, 0
    %p101 = por %p99, %p100
    %p102 = scmp.ne.s32.totalorder %s94, %s96
    %p103 = scmp.eq.s32.totalorder %s23, 1
    %p104 = por %p102, %p103
    %p105 = scmp.ne.s32.totalorder %s96, %s97
    %p106 = scmp.eq.s32.totalorder %s23, 0
    %p107 = por %p105, %p106
    %p108 = scmp.ne.s32.totalorder %s96, %s97
    %p109 = scmp.eq.s32.totalorder %s24, 1
    %p110 = por %p108, %p109
    %p112 = scmp.ne.s32.totalorder %s97, %s111
    %p113 = scmp.eq.s32.totalorder %s24, 0
    %p114 = por %p112, %p113
    %s116 = sadd.s32 %s115, 1
    %p119 = scmp.eq.s32.totalorder %s18, 1
    %p120 = scmp.ne.s32.totalorder %s115, %s117
    %p121 = scmp.eq.s32.totalorder %s18, 0
    %p122 = por %p120, %p121
    %p123 = scmp.ne.s32.totalorder %s115, %s117
    %p124 = scmp.eq.s32.totalorder %s23, 1
    %p125 = por %p123, %p124
    %p126 = scmp.ne.s32.totalorder %s117, %s118
    %p127 = scmp.eq.s32.totalorder %s23, 0
    %p128 = por %p126, %p127
    %p129 = scmp.ne.s32.totalorder %s117, %s118
    %p130 = scmp.eq.s32.totalorder %s24, 1
    %p131 = por %p129, %p130
    %p133 = scmp.ne.s32.totalorder %s118, %s132
    %p134 = scmp.eq.s32.totalorder %s24, 0
    %p135 = por %p133, %p134
    %s137 = sadd.s32 %s136, 1
    %p140 = scmp.eq.s32.totalorder %s18, 1
    %p141 = scmp.ne.s32.totalorder %s136, %s138
    %p142 = scmp.eq.s32.totalorder %s18, 0
    %p143 = por %p141, %p142
    %p144 = scmp.ne.s32.totalorder %s136, %s138
    %p145 = scmp.eq.s32.totalorder %s23, 1
    %p146 = por %p144, %p145
    %p147 = scmp.ne.s32.totalorder %s138, %s139
    %p148 = scmp.eq.s32.totalorder %s23, 0
    %p149 = por %p147, %p148
    %p150 = scmp.ne.s32.totalorder %s138, %s139
    %p151 = scmp.eq.s32.totalorder %s24, 1
    %p152 = por %p150, %p151
    %p154 = scmp.ne.s32.totalorder %s139, %s153
    %p155 = scmp.eq.s32.totalorder %s24, 0
    %p156 = por %p154, %p155
    %s157 = ssub.s32 %s18, %s25
    %p158 = scmp.eq.s32.totalorder %s157, 0
    %s160 = sadd.s32 %s159, 1
    %s161 = scalar_select %p158, %s159, %s160
    %p164 = pneg %p158
    %p165 = scmp.eq.s32.totalorder %s18, 1
    %p166 = por %p164, %p165
    %p167 = scmp.ne.s32.totalorder %s159, %s162
    %p168 = scmp.eq.s32.totalorder %s18, 0
    %p169 = por %p167, %p168
    %p170 = scmp.ne.s32.totalorder %s159, %s162
    %p171 = scmp.eq.s32.totalorder %s23, 1
    %p172 = por %p170, %p171
    %p173 = scmp.ne.s32.totalorder %s162, %s163
    %p174 = scmp.eq.s32.totalorder %s23, 0
    %p175 = por %p173, %p174
    %p176 = scmp.ne.s32.totalorder %s162, %s163
    %p177 = scmp.eq.s32.totalorder %s24, 1
    %p178 = por %p176, %p177
    %p180 = scmp.ne.s32.totalorder %s163, %s179
    %p181 = scmp.eq.s32.totalorder %s24, 0
    %p182 = por %p180, %p181
    %s183 = ssub.s32 %s18, %s25
    %p184 = scmp.eq.s32.totalorder %s183, 0
    %s186 = sadd.s32 %s185, 1
    %s187 = scalar_select %p184, %s185, %s186
    %p190 = pneg %p184
    %p191 = scmp.eq.s32.totalorder %s18, 1
    %p192 = por %p190, %p191
    %p193 = scmp.ne.s32.totalorder %s185, %s188
    %p194 = scmp.eq.s32.totalorder %s18, 0
    %p195 = por %p193, %p194
    %p196 = scmp.ne.s32.totalorder %s185, %s188
    %p197 = scmp.eq.s32.totalorder %s23, 1
    %p198 = por %p196, %p197
    %p199 = scmp.ne.s32.totalorder %s188, %s189
    %p200 = scmp.eq.s32.totalorder %s23, 0
    %p201 = por %p199, %p200
    %p202 = scmp.ne.s32.totalorder %s188, %s189
    %p203 = scmp.eq.s32.totalorder %s24, 1
    %p204 = por %p202, %p203
    %p206 = scmp.ne.s32.totalorder %s189, %s205
    %p207 = scmp.eq.s32.totalorder %s24, 0
    %p208 = por %p206, %p207
    %s209 = ssub.s32 %s18, %s25
    %p210 = scmp.eq.s32.totalorder %s209, 0
    %s212 = sadd.s32 %s211, 1
    %s213 = scalar_select %p210, %s211, %s212
    %p216 = pneg %p210
    %p217 = scmp.eq.s32.totalorder %s18, 1
    %p218 = por %p216, %p217
    %p219 = scmp.ne.s32.totalorder %s211, %s214
    %p220 = scmp.eq.s32.totalorder %s18, 0
    %p221 = por %p219, %p220
    %p222 = scmp.ne.s32.totalorder %s211, %s214
    %p223 = scmp.eq.s32.totalorder %s23, 1
    %p224 = por %p222, %p223
    %p225 = scmp.ne.s32.totalorder %s214, %s215
    %p226 = scmp.eq.s32.totalorder %s23, 0
    %p227 = por %p225, %p226
    %p228 = scmp.ne.s32.totalorder %s214, %s215
    %p229 = scmp.eq.s32.totalorder %s24, 1
    %p230 = por %p228, %p229
    %p232 = scmp.ne.s32.totalorder %s215, %s231
    %p233 = scmp.eq.s32.totalorder %s24, 0
    %p234 = por %p232, %p233
    %s235 = ssub.s32 %s18, %s25
    %p236 = scmp.eq.s32.totalorder %s235, 0
    %s238 = sadd.s32 %s237, 1
    %s239 = scalar_select %p236, %s237, %s238
    %p242 = pneg %p236
    %p243 = scmp.eq.s32.totalorder %s18, 1
    %p244 = por %p242, %p243
    %p245 = scmp.ne.s32.totalorder %s237, %s240
    %p246 = scmp.eq.s32.totalorder %s18, 0
    %p247 = por %p245, %p246
    %p248 = scmp.ne.s32.totalorder %s237, %s240
    %p249 = scmp.eq.s32.totalorder %s23, 1
    %p250 = por %p248, %p249
    %p251 = scmp.ne.s32.totalorder %s240, %s241
    %p252 = scmp.eq.s32.totalorder %s23, 0
    %p253 = por %p251, %p252
    %p254 = scmp.ne.s32.totalorder %s240, %s241
    %p255 = scmp.eq.s32.totalorder %s24, 1
    %p256 = por %p254, %p255
    %p258 = scmp.ne.s32.totalorder %s241, %s257
    %p259 = scmp.eq.s32.totalorder %s24, 0
    %p260 = por %p258, %p259
    %s261 = ssub.s32 %s18, %s25
    %p262 = scmp.eq.s32.totalorder %s261, 0
    %s264 = sadd.s32 %s263, 1
    %s265 = scalar_select %p262, %s263, %s264
    %p268 = pneg %p262
    %p269 = scmp.eq.s32.totalorder %s18, 1
    %p270 = por %p268, %p269
    %p271 = scmp.ne.s32.totalorder %s263, %s266
    %p272 = scmp.eq.s32.totalorder %s18, 0
    %p273 = por %p271, %p272
    %p274 = scmp.ne.s32.totalorder %s263, %s266
    %p275 = scmp.eq.s32.totalorder %s23, 1
    %p276 = por %p274, %p275
    %p277 = scmp.ne.s32.totalorder %s266, %s267
    %p278 = scmp.eq.s32.totalorder %s23, 0
    %p279 = por %p277, %p278
    %p280 = scmp.ne.s32.totalorder %s266, %s267
    %p281 = scmp.eq.s32.totalorder %s24, 1
    %p282 = por %p280, %p281
    %p284 = scmp.ne.s32.totalorder %s267, %s283
    %p285 = scmp.eq.s32.totalorder %s24, 0
    %p286 = por %p284, %p285
    %s287 = ssub.s32 %s18, %s25
    %p288 = scmp.eq.s32.totalorder %s287, 0
    %s290 = sadd.s32 %s289, 1
    %s291 = scalar_select %p288, %s289, %s290
    %p294 = pneg %p288
    %p295 = scmp.eq.s32.totalorder %s18, 1
    %p296 = por %p294, %p295
    %p297 = scmp.ne.s32.totalorder %s289, %s292
    %p298 = scmp.eq.s32.totalorder %s18, 0
    %p299 = por %p297, %p298
    %p300 = scmp.ne.s32.totalorder %s289, %s292
    %p301 = scmp.eq.s32.totalorder %s23, 1
    %p302 = por %p300, %p301
    %p303 = scmp.ne.s32.totalorder %s292, %s293
    %p304 = scmp.eq.s32.totalorder %s23, 0
    %p305 = por %p303, %p304
    %p306 = scmp.ne.s32.totalorder %s292, %s293
    %p307 = scmp.eq.s32.totalorder %s24, 1
    %p308 = por %p306, %p307
    %p310 = scmp.ne.s32.totalorder %s293, %s309
    %p311 = scmp.eq.s32.totalorder %s24, 0
    %p312 = por %p310, %p311
    %p313 = scmp.le.s32.totalorder 1, %s18
    %p314 = scmp.lt.s32.totalorder %s18, 3
    %p315 = pnand %p313, %p314
    %p316 = pneg %p315
    // Predicated region
    $region9: #{dnn_forward.1} parent=5 // pred_check
      _
    $region10: #{dnn_forward.1} parent=5 // pred_check_branch
      %318 = sbr.rel (%p315) target = $region12
    $region11: #{dnn_forward.1} parent=5 // pred_region
      %s319 = ssub.s32 %s18, 1
      // Predicated region
      $region13: #{dnn_forward.1} parent=11 // pred_check
        %p320 = pneg %p65
      $region14: #{dnn_forward.1} parent=11 // pred_check_branch
        %322 = sbr.rel (%p320) target = $region16
      $region15: #{dnn_forward.1} parent=11 // pred_region
        _
      $region16: #{dnn_forward.1} parent=11 // pred_fallthru
        _
      // Predicated region
      $region17: #{dnn_forward.1} parent=11 // pred_check
        %p323 = pneg %p86
      $region18: #{dnn_forward.1} parent=11 // pred_check_branch
        %325 = sbr.rel (%p323) target = $region20
      $region19: #{dnn_forward.1} parent=11 // pred_region
        _
      $region20: #{dnn_forward.1} parent=11 // pred_fallthru
        _
      // Predicated region
      $region21: #{dnn_forward.1} parent=11 // pred_check
        %p326 = pneg %p107
      $region22: #{dnn_forward.1} parent=11 // pred_check_branch
        %328 = sbr.rel (%p326) target = $region24
      $region23: #{dnn_forward.1} parent=11 // pred_region
        _
      $region24: #{dnn_forward.1} parent=11 // pred_fallthru
        _
      // Predicated region
      $region25: #{dnn_forward.1} parent=11 // pred_check
        %p329 = pneg %p128
      $region26: #{dnn_forward.1} parent=11 // pred_check_branch
        %331 = sbr.rel (%p329) target = $region28
      $region27: #{dnn_forward.1} parent=11 // pred_region
        _
      $region28: #{dnn_forward.1} parent=11 // pred_fallthru
        _
      // Predicated region
      $region29: #{dnn_forward.1} parent=11 // pred_check
        %p332 = pneg %p149
      $region30: #{dnn_forward.1} parent=11 // pred_check_branch
        %334 = sbr.rel (%p332) target = $region32
      $region31: #{dnn_forward.1} parent=11 // pred_region
        _
      $region32: #{dnn_forward.1} parent=11 // pred_fallthru
        _
    $region12: #{dnn_forward.1} parent=5 // pred_fallthru
      _
    %p335 = scmp.lt.s32.totalorder %s18, 2
    // Predicated region
    $region33: #{dnn_forward.1} parent=5 // pred_check
      %p336 = pneg %p335
    $region34: #{dnn_forward.1} parent=5 // pred_check_branch
      %338 = sbr.rel (%p336) target = $region36
    $region35: #{dnn_forward.1} parent=5 // pred_region
      // Predicated region
      $region37: #{dnn_forward.1} parent=35 // pred_check
        %p339 = pneg %p38
      $region38: #{dnn_forward.1} parent=35 // pred_check_branch
        %341 = sbr.rel (%p339) target = $region40
      $region39: #{dnn_forward.1} parent=35 // pred_region
        %s342 = smul.u32 16, %s18
        %p343 = scmp.lt.s32.totalorder %s342, 31
        %s344 = scalar_select %p343, %s342, 31
        %s345 = smul.addr %s344, 8
        %s346 = scalar_lea.vmem %s0, %s345
        %s347 = smul.u32 16, %s18
      $region40: #{dnn_forward.1} parent=35 // pred_fallthru
        _
    $region36: #{dnn_forward.1} parent=5 // pred_fallthru
      _
    %p348 = scmp.le.s32.totalorder 1, %s18
    %p349 = scmp.lt.s32.totalorder %s18, 3
    %p350 = pnand %p348, %p349
    %p351 = pneg %p350
    // Predicated region
    $region41: #{dnn_forward.1} parent=5 // pred_check
      _
    $region42: #{dnn_forward.1} parent=5 // pred_check_branch
      %353 = sbr.rel (%p350) target = $region44
    $region43: #{dnn_forward.1} parent=5 // pred_region
      %s354 = ssub.s32 %s18, 1
      %s355 = smul.u32 16, %s23
      %p356 = scmp.lt.s32.totalorder %s355, 31
      %s357 = scalar_select %p356, %s355, 31
      %s358 = smul.addr %s357, 8
      %s359 = scalar_lea.vmem %s0, %s358
      %p360 = pneg %p44
      %p361 = pneg %p41
      %p362 = pneg %p65
      %p363 = pneg %p62
      %p364 = pneg %p86
      %p365 = pneg %p83
      %p366 = pneg %p107
      %p367 = pneg %p104
      %p368 = pneg %p128
      %p369 = pneg %p125
      %p370 = pneg %p149
      %p371 = pneg %p146
      %p372 = pneg %p175
      %p373 = pneg %p172
      %s374 = smul.u32 16, %s23
      %p375 = scmp.lt.s32.totalorder %s374, 31
      %s376 = scalar_select %p375, %s374, 31
      %s377 = smul.addr %s376, 8
      %s378 = scalar_lea.vmem %s6, %s377
      %p379 = pneg %p201
      %p380 = pneg %p198
      %s381 = smul.u32 16, %s23
      %p382 = scmp.lt.s32.totalorder %s381, 31
      %s383 = scalar_select %p382, %s381, 31
      %s384 = smul.addr %s383, 8
      %s385 = scalar_lea.vmem %s7, %s384
      %p386 = pneg %p227
      %p387 = pneg %p224
      %s388 = smul.u32 16, %s23
      %p389 = scmp.lt.s32.totalorder %s388, 31
      %s390 = scalar_select %p389, %s388, 31
      %s391 = smul.addr %s390, 8
      %s392 = scalar_lea.vmem %s8, %s391
      %p393 = pneg %p253
      %p394 = pneg %p250
      %s395 = smul.u32 16, %s23
      %p396 = scmp.lt.s32.totalorder %s395, 31
      %s397 = scalar_select %p396, %s395, 31
      %s398 = smul.addr %s397, 8
      %s399 = scalar_lea.vmem %s9, %s398
      %p400 = pneg %p279
      %p401 = pneg %p276
      %s402 = smul.u32 16, %s23
      %p403 = scmp.lt.s32.totalorder %s402, 31
      %s404 = scalar_select %p403, %s402, 31
      %s405 = smul.addr %s404, 8
      %s406 = scalar_lea.vmem %s10, %s405
      %p407 = pneg %p305
      %p408 = pneg %p302
      %s409 = smul.u32 16, %s23
      %p410 = scmp.lt.s32.totalorder %s409, 31
      %s411 = scalar_select %p410, %s409, 31
      %s412 = smul.addr %s411, 8
      %s413 = scalar_lea.vmem %s11, %s412
      %s414 = smul.u32 16, %s23
      %p415 = scmp.lt.s32.totalorder %s414, 31
      %s416 = scalar_select %p415, %s414, 31
      %s417 = smul.addr %s416, 8
      %s418 = scalar_lea.vmem %s0, %s417
      %s419 = smul.u32 16, %s23
      %s420 = smul.u32 16, %s23
      %p421 = scmp.lt.s32.totalorder %s420, 31
      %s422 = scalar_select %p421, %s420, 31
      %s423 = smul.addr %s422, 8
      %s424 = scalar_lea.vmem %s6, %s423
      %s425 = smul.u32 16, %s23
      %s426 = smul.u32 16, %s23
      %p427 = scmp.lt.s32.totalorder %s426, 31
      %s428 = scalar_select %p427, %s426, 31
      %s429 = smul.addr %s428, 8
      %s430 = scalar_lea.vmem %s7, %s429
      %s431 = smul.u32 16, %s23
      %s432 = smul.u32 16, %s23
      %p433 = scmp.lt.s32.totalorder %s432, 31
      %s434 = scalar_select %p433, %s432, 31
      %s435 = smul.addr %s434, 8
      %s436 = scalar_lea.vmem %s8, %s435
      %s437 = smul.u32 16, %s23
      %s438 = smul.u32 16, %s23
      %p439 = scmp.lt.s32.totalorder %s438, 31
      %s440 = scalar_select %p439, %s438, 31
      %s441 = smul.addr %s440, 8
      %s442 = scalar_lea.vmem %s9, %s441
      %s443 = smul.u32 16, %s23
      %s444 = smul.u32 16, %s23
      %p445 = scmp.lt.s32.totalorder %s444, 31
      %s446 = scalar_select %p445, %s444, 31
      %s447 = smul.addr %s446, 8
      %s448 = scalar_lea.vmem %s10, %s447
      %s449 = smul.u32 16, %s23
      %s450 = smul.u32 16, %s23
      %p451 = scmp.lt.s32.totalorder %s450, 31
      %s452 = scalar_select %p451, %s450, 31
      %s453 = smul.addr %s452, 8
      %s454 = scalar_lea.vmem %s11, %s453
      %s455 = smul.u32 16, %s23
      %v456 = vld [vmem:[%s418] sm:$0xff]
      %v457 = vld [vmem:[%s418 + $0x8] sm:$0xff]
      %v458 = vld [vmem:[%s418 + $0x10] sm:$0xff]
      %v459 = vld [vmem:[%s418 + $0x18] sm:$0xff]
      %v460 = vld [vmem:[%s418 + $0x20] sm:$0xff]
      %v461 = vld [vmem:[%s418 + $0x28] sm:$0xff]
      %v462 = vld [vmem:[%s418 + $0x30] sm:$0xff]
      %v463 = vld [vmem:[%s418 + $0x38] sm:$0xff]
      %v464 = vld [vmem:[%s418 + $0x40] sm:$0xff]
      %v465 = vld [vmem:[%s418 + $0x48] sm:$0xff]
      %v466 = vld [vmem:[%s418 + $0x50] sm:$0xff]
      %v467 = vld [vmem:[%s418 + $0x58] sm:$0xff]
      %v468 = vld [vmem:[%s418 + $0x60] sm:$0xff]
      %v469 = vld [vmem:[%s418 + $0x68] sm:$0xff]
      %v470 = vld [vmem:[%s418 + $0x70] sm:$0xff]
      %v471 = vld [vmem:[%s418 + $0x78] sm:$0xff]
      %v472 = vld [vmem:[%s4] sm:$0x1]
      %v473 = vld [vmem:[%s4 + $0x1] sm:$0x1]
      %v474 = vld [vmem:[%s4 + $0x2] sm:$0x1]
      %v475 = vld [vmem:[%s4 + $0x3] sm:$0x1]
      %v476 = vld [vmem:[%s4 + $0x4] sm:$0x1]
      %v477 = vld [vmem:[%s4 + $0x5] sm:$0x1]
      %v478 = vld [vmem:[%s1] sm:$0xff]
      %v479 = vld [vmem:[%s1 + $0x8] sm:$0xff]
      %v480 = vld [vmem:[%s1 + $0x10] sm:$0xff]
      %v481 = vld [vmem:[%s1 + $0x18] sm:$0xff]
      %v482 = vld [vmem:[%s1 + $0x20] sm:$0xff]
      %v483 = vld [vmem:[%s1 + $0x28] sm:$0xff]
      %v484 = vld [vmem:[%s1 + $0x30] sm:$0xff]
      %v485 = vld [vmem:[%s1 + $0x38] sm:$0xff]
      %v486 = vld [vmem:[%s1 + $0x40] sm:$0xff]
      %v487 = vld [vmem:[%s1 + $0x48] sm:$0xff]
      %v488 = vld [vmem:[%s1 + $0x50] sm:$0xff]
      %v489 = vld [vmem:[%s1 + $0x58] sm:$0xff]
      %v490 = vld [vmem:[%s1 + $0x60] sm:$0xff]
      %v491 = vld [vmem:[%s1 + $0x68] sm:$0xff]
      %v492 = vld [vmem:[%s1 + $0x70] sm:$0xff]
      %v493 = vld [vmem:[%s1 + $0x78] sm:$0xff]
      %v494 = vlaneseq
      %v495 = vshrl.u32 %v494, 7
      %v496 = vsub.s32 0, %v495
      %v497 = vrot.slane %v472, %v496
      %498 = vmatprep.subr.mxu0 0.0
      %499 = vmatpush1.msra.mxu0 %v478
      %500 = vmatprep.subr.mxu0 0.0
      %501 = vmatpush1.msra.mxu0 %v479
      %502 = vmatprep.subr.mxu0 0.0
      %503 = vmatpush1.msra.mxu0 %v480
      %504 = vmatprep.subr.mxu0 0.0
      %505 = vmatpush1.msra.mxu0 %v481
      %506 = vmatprep.subr.mxu0 0.0
      %507 = vmatpush1.msra.mxu0 %v482
      %508 = vmatprep.subr.mxu0 0.0
      %509 = vmatpush1.msra.mxu0 %v483
      %510 = vmatprep.subr.mxu0 0.0
      %511 = vmatpush1.msra.mxu0 %v484
      %512 = vmatprep.subr.mxu0 0.0
      %513 = vmatpush1.msra.mxu0 %v485
      %514 = vmatprep.subr.mxu0 0.0
      %515 = vmatpush1.msra.mxu0 %v486
      %516 = vmatprep.subr.mxu0 0.0
      %517 = vmatpush1.msra.mxu0 %v487
      %518 = vmatprep.subr.mxu0 0.0
      %519 = vmatpush1.msra.mxu0 %v488
      %520 = vmatprep.subr.mxu0 0.0
      %521 = vmatpush1.msra.mxu0 %v489
      %522 = vmatprep.subr.mxu0 0.0
      %523 = vmatpush1.msra.mxu0 %v490
      %524 = vmatprep.subr.mxu0 0.0
      %525 = vmatpush1.msra.mxu0 %v491
      %526 = vmatprep.subr.mxu0 0.0
      %527 = vmatpush1.msra.mxu0 %v492
      %528 = vmatprep.subr.mxu0 0.0
      %529 = vmatpush1.msra.mxu0 %v493
      %530 = vmatprep.subr.mxu0 0.0
      %531 = vmatpush1.msra.mxu0 0.0
      %532 = vmatprep.subr.mxu0 0.0
      %533 = vmatpush1.msra.mxu0 0.0
      %534 = vmatprep.subr.mxu0 0.0
      %535 = vmatpush1.msra.mxu0 0.0
      %536 = vmatprep.subr.mxu0 0.0
      %537 = vmatpush1.msra.mxu0 0.0
      %538 = vmatprep.subr.mxu0 0.0
      %539 = vmatpush1.msra.mxu0 0.0
      %540 = vmatprep.subr.mxu0 0.0
      %541 = vmatpush1.msra.mxu0 0.0
      %542 = vmatprep.subr.mxu0 0.0
      %543 = vmatpush1.msra.mxu0 0.0
      %544 = vmatprep.subr.mxu0 0.0
      %545 = vmatpush1.msra.mxu0 0.0
      %546 = vmatprep.subr.mxu0 0.0
      %547 = vmatpush1.msra.mxu0 0.0
      %548 = vmatprep.subr.mxu0 0.0
      %549 = vmatpush1.msra.mxu0 0.0
      %550 = vmatprep.subr.mxu0 0.0
      %551 = vmatpush1.msra.mxu0 0.0
      %552 = vmatprep.subr.mxu0 0.0
      %553 = vmatpush1.msra.mxu0 0.0
      %554 = vmatprep.subr.mxu0 0.0
      %555 = vmatpush1.msra.mxu0 0.0
      %556 = vmatprep.subr.mxu0 0.0
      %557 = vmatpush1.msra.mxu0 0.0
      %558 = vmatprep.subr.mxu0 0.0
      %559 = vmatpush1.msra.mxu0 0.0
      %560 = vmatprep.subr.mxu0 0.0
      %561 = vmatpush1.msra.mxu0 0.0
      %562 = vmatprep.mubr.f32.mxu0 0.0
      %563 = vmatmul.mubr.f32.gmra.mrb[0].mxu0 %v456
      %v564 = vpop.f32.mrb[0].mxu0
      %v565 = vadd.f32 %v497, %v564
      %v566 = vpop.f32.mrb[0].mxu0
      %567 = vmatprep.mubr.f32.mxu0 0.0
      %568 = vmatmul.mubr.f32.gmra.mrb[0].mxu0 %v457
      %v569 = vpop.f32.mrb[0].mxu0
      %v570 = vadd.f32 %v497, %v569
      %v571 = vpop.f32.mrb[0].mxu0
      %572 = vmatprep.mubr.f32.mxu0 0.0
      %573 = vmatmul.mubr.f32.gmra.mrb[0].mxu0 %v458
      %v574 = vpop.f32.mrb[0].mxu0
      %v575 = vadd.f32 %v497, %v574
      %v576 = vpop.f32.mrb[0].mxu0
      %577 = vmatprep.mubr.f32.mxu0 0.0
      %578 = vmatmul.mubr.f32.gmra.mrb[0].mxu0 %v459
      %v579 = vpop.f32.mrb[0].mxu0
      %v580 = vadd.f32 %v497, %v579
      %v581 = vpop.f32.mrb[0].mxu0
      %582 = vmatprep.mubr.f32.mxu0 0.0
      %583 = vmatmul.mubr.f32.gmra.mrb[0].mxu0 %v460
      %v584 = vpop.f32.mrb[0].mxu0
      %v585 = vadd.f32 %v497, %v584
      %v586 = vpop.f32.mrb[0].mxu0
      %587 = vmatprep.mubr.f32.mxu0 0.0
      %588 = vmatmul.mubr.f32.gmra.mrb[0].mxu0 %v461
      %v589 = vpop.f32.mrb[0].mxu0
      %v590 = vadd.f32 %v497, %v589
      %v591 = vpop.f32.mrb[0].mxu0
      %592 = vmatprep.mubr.f32.mxu0 0.0
      %593 = vmatmul.mubr.f32.gmra.mrb[0].mxu0 %v462
      %v594 = vpop.f32.mrb[0].mxu0
      %v595 = vadd.f32 %v497, %v594
      %v596 = vpop.f32.mrb[0].mxu0
      %597 = vmatprep.mubr.f32.mxu0 0.0
      %598 = vmatmul.mubr.f32.gmra.mrb[0].mxu0 %v463
      %v599 = vpop.f32.mrb[0].mxu0
      %v600 = vadd.f32 %v497, %v599
      %v601 = vpop.f32.mrb[0].mxu0
      %602 = vmatprep.mubr.f32.mxu0 0.0
      %603 = vmatmul.mubr.f32.gmra.mrb[0].mxu0 %v464
      %v604 = vpop.f32.mrb[0].mxu0
      %v605 = vadd.f32 %v497, %v604
      %v606 = vpop.f32.mrb[0].mxu0
      %607 = vmatprep.mubr.f32.mxu0 0.0
      %608 = vmatmul.mubr.f32.gmra.mrb[0].mxu0 %v465
      %v609 = vpop.f32.mrb[0].mxu0
      %v610 = vadd.f32 %v497, %v609
      %v611 = vpop.f32.mrb[0].mxu0
      %612 = vmatprep.mubr.f32.mxu0 0.0
      %613 = vmatmul.mubr.f32.gmra.mrb[0].mxu0 %v466
      %v614 = vpop.f32.mrb[0].mxu0
      %v615 = vadd.f32 %v497, %v614
      %v616 = vpop.f32.mrb[0].mxu0
      %617 = vmatprep.mubr.f32.mxu0 0.0
      %618 = vmatmul.mubr.f32.gmra.mrb[0].mxu0 %v467
      %v619 = vpop.f32.mrb[0].mxu0
      %v620 = vadd.f32 %v497, %v619
      %v621 = vpop.f32.mrb[0].mxu0
      %622 = vmatprep.mubr.f32.mxu0 0.0
      %623 = vmatmul.mubr.f32.gmra.mrb[0].mxu0 %v468
      %v624 = vpop.f32.mrb[0].mxu0
      %v625 = vadd.f32 %v497, %v624
      %v626 = vpop.f32.mrb[0].mxu0
      %627 = vmatprep.mubr.f32.mxu0 0.0
      %628 = vmatmul.mubr.f32.gmra.mrb[0].mxu0 %v469
      %v629 = vpop.f32.mrb[0].mxu0
      %v630 = vadd.f32 %v497, %v629
      %v631 = vpop.f32.mrb[0].mxu0
      %632 = vmatprep.mubr.f32.mxu0 0.0
      %633 = vmatmul.mubr.f32.gmra.mrb[0].mxu0 %v470
      %v634 = vpop.f32.mrb[0].mxu0
      %v635 = vadd.f32 %v497, %v634
      %v636 = vpop.f32.mrb[0].mxu0
      %637 = vmatprep.mubr.f32.mxu0 0.0
      %638 = vmatmul.mubr.f32.gmra.mrb[0].mxu0 %v471
      %v639 = vpop.f32.mrb[0].mxu0
      %v640 = vadd.f32 %v497, %v639
      %v641 = vpop.f32.mrb[0].mxu0
      %642 = vdwg.mxu0
      %643 = vst [vmem:[%s424] sm:$0xff] %v565
      %644 = vst [vmem:[%s424 + $0x8] sm:$0xff] %v570
      %645 = vst [vmem:[%s424 + $0x10] sm:$0xff] %v575
      %646 = vst [vmem:[%s424 + $0x18] sm:$0xff] %v580
      %647 = vst [vmem:[%s424 + $0x20] sm:$0xff] %v585
      %648 = vst [vmem:[%s424 + $0x28] sm:$0xff] %v590
      %649 = vst [vmem:[%s424 + $0x30] sm:$0xff] %v595
      %650 = vst [vmem:[%s424 + $0x38] sm:$0xff] %v600
      %651 = vst [vmem:[%s424 + $0x40] sm:$0xff] %v605
      %652 = vst [vmem:[%s424 + $0x48] sm:$0xff] %v610
      %653 = vst [vmem:[%s424 + $0x50] sm:$0xff] %v615
      %654 = vst [vmem:[%s424 + $0x58] sm:$0xff] %v620
      %655 = vst [vmem:[%s424 + $0x60] sm:$0xff] %v625
      %656 = vst [vmem:[%s424 + $0x68] sm:$0xff] %v630
      %657 = vst [vmem:[%s424 + $0x70] sm:$0xff] %v635
      %658 = vst [vmem:[%s424 + $0x78] sm:$0xff] %v640
      %v659 = vlaneseq
      %v660 = vshrl.u32 %v659, 7
      %v661 = vsub.s32 0, %v660
      %v662 = vrot.slane %v473, %v661
      %v663 = vmul.f32 %v565, %v662
      %v664 = vmul.f32 %v570, %v662
      %v665 = vmul.f32 %v575, %v662
      %v666 = vmul.f32 %v580, %v662
      %v667 = vmul.f32 %v585, %v662
      %v668 = vmul.f32 %v590, %v662
      %v669 = vmul.f32 %v595, %v662
      %v670 = vmul.f32 %v600, %v662
      %v671 = vmul.f32 %v605, %v662
      %v672 = vmul.f32 %v610, %v662
      %v673 = vmul.f32 %v615, %v662
      %v674 = vmul.f32 %v620, %v662
      %v675 = vmul.f32 %v625, %v662
      %v676 = vmul.f32 %v630, %v662
      %v677 = vmul.f32 %v635, %v662
      %v678 = vmul.f32 %v640, %v662
      %v679 = vlaneseq
      %v680 = vshrl.u32 %v679, 7
      %v681 = vsub.s32 0, %v680
      %v682 = vrot.slane %v474, %v681
      %v683 = vadd.f32 %v663, %v682
      %v684 = vadd.f32 %v664, %v682
      %v685 = vadd.f32 %v665, %v682
      %v686 = vadd.f32 %v666, %v682
      %v687 = vadd.f32 %v667, %v682
      %v688 = vadd.f32 %v668, %v682
      %v689 = vadd.f32 %v669, %v682
      %v690 = vadd.f32 %v670, %v682
      %v691 = vadd.f32 %v671, %v682
      %v692 = vadd.f32 %v672, %v682
      %v693 = vadd.f32 %v673, %v682
      %v694 = vadd.f32 %v674, %v682
      %v695 = vadd.f32 %v675, %v682
      %v696 = vadd.f32 %v676, %v682
      %v697 = vadd.f32 %v677, %v682
      %v698 = vadd.f32 %v678, %v682
      %v699 = vmax.f32 %v683, 0.0
      %v700 = vmax.f32 %v684, 0.0
      %v701 = vmax.f32 %v685, 0.0
      %v702 = vmax.f32 %v686, 0.0
      %v703 = vmax.f32 %v687, 0.0
      %v704 = vmax.f32 %v688, 0.0
      %v705 = vmax.f32 %v689, 0.0
      %v706 = vmax.f32 %v690, 0.0
      %v707 = vmax.f32 %v691, 0.0
      %v708 = vmax.f32 %v692, 0.0
      %v709 = vmax.f32 %v693, 0.0
      %v710 = vmax.f32 %v694, 0.0
      %v711 = vmax.f32 %v695, 0.0
      %v712 = vmax.f32 %v696, 0.0
      %v713 = vmax.f32 %v697, 0.0
      %v714 = vmax.f32 %v698, 0.0
      %715 = vst [vmem:[%s448] sm:$0xff] %v699
      %716 = vst [vmem:[%s448 + $0x8] sm:$0xff] %v700
      %717 = vst [vmem:[%s448 + $0x10] sm:$0xff] %v701
      %718 = vst [vmem:[%s448 + $0x18] sm:$0xff] %v702
      %719 = vst [vmem:[%s448 + $0x20] sm:$0xff] %v703
      %720 = vst [vmem:[%s448 + $0x28] sm:$0xff] %v704
      %721 = vst [vmem:[%s448 + $0x30] sm:$0xff] %v705
      %722 = vst [vmem:[%s448 + $0x38] sm:$0xff] %v706
      %723 = vst [vmem:[%s448 + $0x40] sm:$0xff] %v707
      %724 = vst [vmem:[%s448 + $0x48] sm:$0xff] %v708
      %725 = vst [vmem:[%s448 + $0x50] sm:$0xff] %v709
      %726 = vst [vmem:[%s448 + $0x58] sm:$0xff] %v710
      %727 = vst [vmem:[%s448 + $0x60] sm:$0xff] %v711
      %728 = vst [vmem:[%s448 + $0x68] sm:$0xff] %v712
      %729 = vst [vmem:[%s448 + $0x70] sm:$0xff] %v713
      %730 = vst [vmem:[%s448 + $0x78] sm:$0xff] %v714
      %v731 = vld [vmem:[%s2] sm:$0xff]
      %v732 = vld [vmem:[%s2 + $0x8] sm:$0xff]
      %v733 = vld [vmem:[%s2 + $0x10] sm:$0xff]
      %v734 = vld [vmem:[%s2 + $0x18] sm:$0xff]
      %v735 = vld [vmem:[%s2 + $0x20] sm:$0xff]
      %v736 = vld [vmem:[%s2 + $0x28] sm:$0xff]
      %v737 = vld [vmem:[%s2 + $0x30] sm:$0xff]
      %v738 = vld [vmem:[%s2 + $0x38] sm:$0xff]
      %v739 = vld [vmem:[%s2 + $0x40] sm:$0xff]
      %v740 = vld [vmem:[%s2 + $0x48] sm:$0xff]
      %v741 = vld [vmem:[%s2 + $0x50] sm:$0xff]
      %v742 = vld [vmem:[%s2 + $0x58] sm:$0xff]
      %v743 = vld [vmem:[%s2 + $0x60] sm:$0xff]
      %v744 = vld [vmem:[%s2 + $0x68] sm:$0xff]
      %v745 = vld [vmem:[%s2 + $0x70] sm:$0xff]
      %v746 = vld [vmem:[%s2 + $0x78] sm:$0xff]
      %v747 = vlaneseq
      %v748 = vshrl.u32 %v747, 7
      %v749 = vsub.s32 0, %v748
      %v750 = vrot.slane %v475, %v749
      %751 = vmatprep.subr.mxu0 0.0
      %752 = vmatpush1.msra.mxu0 %v731
      %753 = vmatprep.subr.mxu0 0.0
      %754 = vmatpush1.msra.mxu0 %v732
      %755 = vmatprep.subr.mxu0 0.0
      %756 = vmatpush1.msra.mxu0 %v733
      %757 = vmatprep.subr.mxu0 0.0
      %758 = vmatpush1.msra.mxu0 %v734
      %759 = vmatprep.subr.mxu0 0.0
      %760 = vmatpush1.msra.mxu0 %v735
      %761 = vmatprep.subr.mxu0 0.0
      %762 = vmatpush1.msra.mxu0 %v736
      %763 = vmatprep.subr.mxu0 0.0
      %764 = vmatpush1.msra.mxu0 %v737
      %765 = vmatprep.subr.mxu0 0.0
      %766 = vmatpush1.msra.mxu0 %v738
      %767 = vmatprep.subr.mxu0 0.0
      %768 = vmatpush1.msra.mxu0 %v739
      %769 = vmatprep.subr.mxu0 0.0
      %770 = vmatpush1.msra.mxu0 %v740
      %771 = vmatprep.subr.mxu0 0.0
      %772 = vmatpush1.msra.mxu0 %v741
      %773 = vmatprep.subr.mxu0 0.0
      %774 = vmatpush1.msra.mxu0 %v742
      %775 = vmatprep.subr.mxu0 0.0
      %776 = vmatpush1.msra.mxu0 %v743
      %777 = vmatprep.subr.mxu0 0.0
      %778 = vmatpush1.msra.mxu0 %v744
      %779 = vmatprep.subr.mxu0 0.0
      %780 = vmatpush1.msra.mxu0 %v745
      %781 = vmatprep.subr.mxu0 0.0
      %782 = vmatpush1.msra.mxu0 %v746
      %783 = vmatprep.subr.mxu0 0.0
      %784 = vmatpush1.msra.mxu0 0.0
      %785 = vmatprep.subr.mxu0 0.0
      %786 = vmatpush1.msra.mxu0 0.0
      %787 = vmatprep.subr.mxu0 0.0
      %788 = vmatpush1.msra.mxu0 0.0
      %789 = vmatprep.subr.mxu0 0.0
      %790 = vmatpush1.msra.mxu0 0.0
      %791 = vmatprep.subr.mxu0 0.0
      %792 = vmatpush1.msra.mxu0 0.0
      %793 = vmatprep.subr.mxu0 0.0
      %794 = vmatpush1.msra.mxu0 0.0
      %795 = vmatprep.subr.mxu0 0.0
      %796 = vmatpush1.msra.mxu0 0.0
      %797 = vmatprep.subr.mxu0 0.0
      %798 = vmatpush1.msra.mxu0 0.0
      %799 = vmatprep.subr.mxu0 0.0
      %800 = vmatpush1.msra.mxu0 0.0
      %801 = vmatprep.subr.mxu0 0.0
      %802 = vmatpush1.msra.mxu0 0.0
      %803 = vmatprep.subr.mxu0 0.0
      %804 = vmatpush1.msra.mxu0 0.0
      %805 = vmatprep.subr.mxu0 0.0
      %806 = vmatpush1.msra.mxu0 0.0
      %807 = vmatprep.subr.mxu0 0.0
      %808 = vmatpush1.msra.mxu0 0.0
      %809 = vmatprep.subr.mxu0 0.0
      %810 = vmatpush1.msra.mxu0 0.0
      %811 = vmatprep.subr.mxu0 0.0
      %812 = vmatpush1.msra.mxu0 0.0
      %813 = vmatprep.subr.mxu0 0.0
      %814 = vmatpush1.msra.mxu0 0.0
      %815 = vmatprep.mubr.f32.mxu0 0.0
      %816 = vmatmul.mubr.f32.gmra.mrb[0].mxu0 %v699
      %v817 = vpop.f32.mrb[0].mxu0
      %v818 = vadd.f32 %v750, %v817
      %v819 = vpop.f32.mrb[0].mxu0
      %820 = vmatprep.mubr.f32.mxu0 0.0
      %821 = vmatmul.mubr.f32.gmra.mrb[0].mxu0 %v700
      %v822 = vpop.f32.mrb[0].mxu0
      %v823 = vadd.f32 %v750, %v822
      %v824 = vpop.f32.mrb[0].mxu0
      %825 = vmatprep.mubr.f32.mxu0 0.0
      %826 = vmatmul.mubr.f32.gmra.mrb[0].mxu0 %v701
      %v827 = vpop.f32.mrb[0].mxu0
      %v828 = vadd.f32 %v750, %v827
      %v829 = vpop.f32.mrb[0].mxu0
      %830 = vmatprep.mubr.f32.mxu0 0.0
      %831 = vmatmul.mubr.f32.gmra.mrb[0].mxu0 %v702
      %v832 = vpop.f32.mrb[0].mxu0
      %v833 = vadd.f32 %v750, %v832
      %v834 = vpop.f32.mrb[0].mxu0
      %835 = vmatprep.mubr.f32.mxu0 0.0
      %836 = vmatmul.mubr.f32.gmra.mrb[0].mxu0 %v703
      %v837 = vpop.f32.mrb[0].mxu0
      %v838 = vadd.f32 %v750, %v837
      %v839 = vpop.f32.mrb[0].mxu0
      %840 = vmatprep.mubr.f32.mxu0 0.0
      %841 = vmatmul.mubr.f32.gmra.mrb[0].mxu0 %v704
      %v842 = vpop.f32.mrb[0].mxu0
      %v843 = vadd.f32 %v750, %v842
      %v844 = vpop.f32.mrb[0].mxu0
      %845 = vmatprep.mubr.f32.mxu0 0.0
      %846 = vmatmul.mubr.f32.gmra.mrb[0].mxu0 %v705
      %v847 = vpop.f32.mrb[0].mxu0
      %v848 = vadd.f32 %v750, %v847
      %v849 = vpop.f32.mrb[0].mxu0
      %850 = vmatprep.mubr.f32.mxu0 0.0
      %851 = vmatmul.mubr.f32.gmra.mrb[0].mxu0 %v706
      %v852 = vpop.f32.mrb[0].mxu0
      %v853 = vadd.f32 %v750, %v852
      %v854 = vpop.f32.mrb[0].mxu0
      %855 = vmatprep.mubr.f32.mxu0 0.0
      %856 = vmatmul.mubr.f32.gmra.mrb[0].mxu0 %v707
      %v857 = vpop.f32.mrb[0].mxu0
      %v858 = vadd.f32 %v750, %v857
      %v859 = vpop.f32.mrb[0].mxu0
      %860 = vmatprep.mubr.f32.mxu0 0.0
      %861 = vmatmul.mubr.f32.gmra.mrb[0].mxu0 %v708
      %v862 = vpop.f32.mrb[0].mxu0
      %v863 = vadd.f32 %v750, %v862
      %v864 = vpop.f32.mrb[0].mxu0
      %865 = vmatprep.mubr.f32.mxu0 0.0
      %866 = vmatmul.mubr.f32.gmra.mrb[0].mxu0 %v709
      %v867 = vpop.f32.mrb[0].mxu0
      %v868 = vadd.f32 %v750, %v867
      %v869 = vpop.f32.mrb[0].mxu0
      %870 = vmatprep.mubr.f32.mxu0 0.0
      %871 = vmatmul.mubr.f32.gmra.mrb[0].mxu0 %v710
      %v872 = vpop.f32.mrb[0].mxu0
      %v873 = vadd.f32 %v750, %v872
      %v874 = vpop.f32.mrb[0].mxu0
      %875 = vmatprep.mubr.f32.mxu0 0.0
      %876 = vmatmul.mubr.f32.gmra.mrb[0].mxu0 %v711
      %v877 = vpop.f32.mrb[0].mxu0
      %v878 = vadd.f32 %v750, %v877
      %v879 = vpop.f32.mrb[0].mxu0
      %880 = vmatprep.mubr.f32.mxu0 0.0
      %881 = vmatmul.mubr.f32.gmra.mrb[0].mxu0 %v712
      %v882 = vpop.f32.mrb[0].mxu0
      %v883 = vadd.f32 %v750, %v882
      %v884 = vpop.f32.mrb[0].mxu0
      %885 = vmatprep.mubr.f32.mxu0 0.0
      %886 = vmatmul.mubr.f32.gmra.mrb[0].mxu0 %v713
      %v887 = vpop.f32.mrb[0].mxu0
      %v888 = vadd.f32 %v750, %v887
      %v889 = vpop.f32.mrb[0].mxu0
      %890 = vmatprep.mubr.f32.mxu0 0.0
      %891 = vmatmul.mubr.f32.gmra.mrb[0].mxu0 %v714
      %v892 = vpop.f32.mrb[0].mxu0
      %v893 = vadd.f32 %v750, %v892
      %v894 = vpop.f32.mrb[0].mxu0
      %895 = vdwg.mxu0
      %896 = vst [vmem:[%s430] sm:$0xff] %v818
      %897 = vst [vmem:[%s430 + $0x8] sm:$0xff] %v823
      %898 = vst [vmem:[%s430 + $0x10] sm:$0xff] %v828
      %899 = vst [vmem:[%s430 + $0x18] sm:$0xff] %v833
      %900 = vst [vmem:[%s430 + $0x20] sm:$0xff] %v838
      %901 = vst [vmem:[%s430 + $0x28] sm:$0xff] %v843
      %902 = vst [vmem:[%s430 + $0x30] sm:$0xff] %v848
      %903 = vst [vmem:[%s430 + $0x38] sm:$0xff] %v853
      %904 = vst [vmem:[%s430 + $0x40] sm:$0xff] %v858
      %905 = vst [vmem:[%s430 + $0x48] sm:$0xff] %v863
      %906 = vst [vmem:[%s430 + $0x50] sm:$0xff] %v868
      %907 = vst [vmem:[%s430 + $0x58] sm:$0xff] %v873
      %908 = vst [vmem:[%s430 + $0x60] sm:$0xff] %v878
      %909 = vst [vmem:[%s430 + $0x68] sm:$0xff] %v883
      %910 = vst [vmem:[%s430 + $0x70] sm:$0xff] %v888
      %911 = vst [vmem:[%s430 + $0x78] sm:$0xff] %v893
      %v912 = vlaneseq
      %v913 = vshrl.u32 %v912, 7
      %v914 = vsub.s32 0, %v913
      %v915 = vrot.slane %v476, %v914
      %v916 = vmul.f32 %v818, %v915
      %v917 = vmul.f32 %v823, %v915
      %v918 = vmul.f32 %v828, %v915
      %v919 = vmul.f32 %v833, %v915
      %v920 = vmul.f32 %v838, %v915
      %v921 = vmul.f32 %v843, %v915
      %v922 = vmul.f32 %v848, %v915
      %v923 = vmul.f32 %v853, %v915
      %v924 = vmul.f32 %v858, %v915
      %v925 = vmul.f32 %v863, %v915
      %v926 = vmul.f32 %v868, %v915
      %v927 = vmul.f32 %v873, %v915
      %v928 = vmul.f32 %v878, %v915
      %v929 = vmul.f32 %v883, %v915
      %v930 = vmul.f32 %v888, %v915
      %v931 = vmul.f32 %v893, %v915
      %v932 = vlaneseq
      %v933 = vshrl.u32 %v932, 7
      %v934 = vsub.s32 0, %v933
      %v935 = vrot.slane %v477, %v934
      %v936 = vadd.f32 %v916, %v935
      %v937 = vadd.f32 %v917, %v935
      %v938 = vadd.f32 %v918, %v935
      %v939 = vadd.f32 %v919, %v935
      %v940 = vadd.f32 %v920, %v935
      %v941 = vadd.f32 %v921, %v935
      %v942 = vadd.f32 %v922, %v935
      %v943 = vadd.f32 %v923, %v935
      %v944 = vadd.f32 %v924, %v935
      %v945 = vadd.f32 %v925, %v935
      %v946 = vadd.f32 %v926, %v935
      %v947 = vadd.f32 %v927, %v935
      %v948 = vadd.f32 %v928, %v935
      %v949 = vadd.f32 %v929, %v935
      %v950 = vadd.f32 %v930, %v935
      %v951 = vadd.f32 %v931, %v935
      %v952 = vmax.f32 %v936, 0.0
      %v953 = vmax.f32 %v937, 0.0
      %v954 = vmax.f32 %v938, 0.0
      %v955 = vmax.f32 %v939, 0.0
      %v956 = vmax.f32 %v940, 0.0
      %v957 = vmax.f32 %v941, 0.0
      %v958 = vmax.f32 %v942, 0.0
      %v959 = vmax.f32 %v943, 0.0
      %v960 = vmax.f32 %v944, 0.0
      %v961 = vmax.f32 %v945, 0.0
      %v962 = vmax.f32 %v946, 0.0
      %v963 = vmax.f32 %v947, 0.0
      %v964 = vmax.f32 %v948, 0.0
      %v965 = vmax.f32 %v949, 0.0
      %v966 = vmax.f32 %v950, 0.0
      %v967 = vmax.f32 %v951, 0.0
      %968 = vst [vmem:[%s454] sm:$0xff] %v952
      %969 = vst [vmem:[%s454 + $0x8] sm:$0xff] %v953
      %970 = vst [vmem:[%s454 + $0x10] sm:$0xff] %v954
      %971 = vst [vmem:[%s454 + $0x18] sm:$0xff] %v955
      %972 = vst [vmem:[%s454 + $0x20] sm:$0xff] %v956
      %973 = vst [vmem:[%s454 + $0x28] sm:$0xff] %v957
      %974 = vst [vmem:[%s454 + $0x30] sm:$0xff] %v958
      %975 = vst [vmem:[%s454 + $0x38] sm:$0xff] %v959
      %976 = vst [vmem:[%s454 + $0x40] sm:$0xff] %v960
      %977 = vst [vmem:[%s454 + $0x48] sm:$0xff] %v961
      %978 = vst [vmem:[%s454 + $0x50] sm:$0xff] %v962
      %979 = vst [vmem:[%s454 + $0x58] sm:$0xff] %v963
      %980 = vst [vmem:[%s454 + $0x60] sm:$0xff] %v964
      %981 = vst [vmem:[%s454 + $0x68] sm:$0xff] %v965
      %982 = vst [vmem:[%s454 + $0x70] sm:$0xff] %v966
      %983 = vst [vmem:[%s454 + $0x78] sm:$0xff] %v967
      %v984 = vld [vmem:[%s3] sm:$0xff]
      %v985 = vld [vmem:[%s3 + $0x8] sm:$0xff]
      %v986 = vld [vmem:[%s3 + $0x10] sm:$0xff]
      %v987 = vld [vmem:[%s3 + $0x18] sm:$0xff]
      %v988 = vld [vmem:[%s3 + $0x20] sm:$0xff]
      %v989 = vld [vmem:[%s3 + $0x28] sm:$0xff]
      %v990 = vld [vmem:[%s3 + $0x30] sm:$0xff]
      %v991 = vld [vmem:[%s3 + $0x38] sm:$0xff]
      %v992 = vld [vmem:[%s3 + $0x40] sm:$0xff]
      %v993 = vld [vmem:[%s3 + $0x48] sm:$0xff]
      %v994 = vld [vmem:[%s3 + $0x50] sm:$0xff]
      %v995 = vld [vmem:[%s3 + $0x58] sm:$0xff]
      %v996 = vld [vmem:[%s3 + $0x60] sm:$0xff]
      %v997 = vld [vmem:[%s3 + $0x68] sm:$0xff]
      %v998 = vld [vmem:[%s3 + $0x70] sm:$0xff]
      %v999 = vld [vmem:[%s3 + $0x78] sm:$0xff]
      %v1000 = vld [vmem:[%s5] sm:$0x1]
      %v1002 = vlaneseq
      %v1003 = vshrl.u32 %v1002, 7
      %v1004 = vsub.s32 0, %v1003
      %v1005 = vrot.slane %v1000, %v1004
      %1007 = vmatprep.subr.mxu0 0.0
      %1008 = vmatpush1.msra.mxu0 %v984
      %1009 = vmatprep.subr.mxu0 0.0
      %1010 = vmatpush1.msra.mxu0 %v985
      %1011 = vmatprep.subr.mxu0 0.0
      %1012 = vmatpush1.msra.mxu0 %v986
      %1013 = vmatprep.subr.mxu0 0.0
      %1014 = vmatpush1.msra.mxu0 %v987
      %1015 = vmatprep.subr.mxu0 0.0
      %1016 = vmatpush1.msra.mxu0 %v988
      %1017 = vmatprep.subr.mxu0 0.0
      %1018 = vmatpush1.msra.mxu0 %v989
      %1019 = vmatprep.subr.mxu0 0.0
      %1020 = vmatpush1.msra.mxu0 %v990
      %1021 = vmatprep.subr.mxu0 0.0
      %1022 = vmatpush1.msra.mxu0 %v991
      %1023 = vmatprep.subr.mxu0 0.0
      %1024 = vmatpush1.msra.mxu0 %v992
      %1025 = vmatprep.subr.mxu0 0.0
      %1026 = vmatpush1.msra.mxu0 %v993
      %1027 = vmatprep.subr.mxu0 0.0
      %1028 = vmatpush1.msra.mxu0 %v994
      %1029 = vmatprep.subr.mxu0 0.0
      %1030 = vmatpush1.msra.mxu0 %v995
      %1031 = vmatprep.subr.mxu0 0.0
      %1032 = vmatpush1.msra.mxu0 %v996
      %1033 = vmatprep.subr.mxu0 0.0
      %1034 = vmatpush1.msra.mxu0 %v997
      %1035 = vmatprep.subr.mxu0 0.0
      %1036 = vmatpush1.msra.mxu0 %v998
      %1037 = vmatprep.subr.mxu0 0.0
      %1038 = vmatpush1.msra.mxu0 %v999
      %1039 = vmatprep.subr.mxu0 0.0
      %1040 = vmatpush1.msra.mxu0 0.0
      %1041 = vmatprep.subr.mxu0 0.0
      %1042 = vmatpush1.msra.mxu0 0.0
      %1043 = vmatprep.subr.mxu0 0.0
      %1044 = vmatpush1.msra.mxu0 0.0
      %1045 = vmatprep.subr.mxu0 0.0
      %1046 = vmatpush1.msra.mxu0 0.0
      %1047 = vmatprep.subr.mxu0 0.0
      %1048 = vmatpush1.msra.mxu0 0.0
      %1049 = vmatprep.subr.mxu0 0.0
      %1050 = vmatpush1.msra.mxu0 0.0
      %1051 = vmatprep.subr.mxu0 0.0
      %1052 = vmatpush1.msra.mxu0 0.0
      %1053 = vmatprep.subr.mxu0 0.0
      %1054 = vmatpush1.msra.mxu0 0.0
      %1055 = vmatprep.subr.mxu0 0.0
      %1056 = vmatpush1.msra.mxu0 0.0
      %1057 = vmatprep.subr.mxu0 0.0
      %1058 = vmatpush1.msra.mxu0 0.0
      %1059 = vmatprep.subr.mxu0 0.0
      %1060 = vmatpush1.msra.mxu0 0.0
      %1061 = vmatprep.subr.mxu0 0.0
      %1062 = vmatpush1.msra.mxu0 0.0
      %1063 = vmatprep.subr.mxu0 0.0
      %1064 = vmatpush1.msra.mxu0 0.0
      %1065 = vmatprep.subr.mxu0 0.0
      %1066 = vmatpush1.msra.mxu0 0.0
      %1067 = vmatprep.subr.mxu0 0.0
      %1068 = vmatpush1.msra.mxu0 0.0
      %1069 = vmatprep.subr.mxu0 0.0
      %1070 = vmatpush1.msra.mxu0 0.0
      %1071 = vmatprep.mubr.f32.mxu0 0.0
      %1072 = vmatmul.mubr.f32.gmra.mrb[0].mxu0 %v952
      %v1073 = vpop.f32.mrb[0].mxu0
      %v1074 = vadd.f32 %v1005, %v1073
      %v1075 = vpop.f32.mrb[0].mxu0
      %1076 = vmatprep.mubr.f32.mxu0 0.0
      %1077 = vmatmul.mubr.f32.gmra.mrb[0].mxu0 %v953
      %v1078 = vpop.f32.mrb[0].mxu0
      %v1079 = vadd.f32 %v1005, %v1078
      %v1080 = vpop.f32.mrb[0].mxu0
      %1081 = vmatprep.mubr.f32.mxu0 0.0
      %1082 = vmatmul.mubr.f32.gmra.mrb[0].mxu0 %v954
      %v1083 = vpop.f32.mrb[0].mxu0
      %v1084 = vadd.f32 %v1005, %v1083
      %v1085 = vpop.f32.mrb[0].mxu0
      %1086 = vmatprep.mubr.f32.mxu0 0.0
      %1087 = vmatmul.mubr.f32.gmra.mrb[0].mxu0 %v955
      %v1088 = vpop.f32.mrb[0].mxu0
      %v1089 = vadd.f32 %v1005, %v1088
      %v1090 = vpop.f32.mrb[0].mxu0
      %1091 = vmatprep.mubr.f32.mxu0 0.0
      %1092 = vmatmul.mubr.f32.gmra.mrb[0].mxu0 %v956
      %v1093 = vpop.f32.mrb[0].mxu0
      %v1094 = vadd.f32 %v1005, %v1093
      %v1095 = vpop.f32.mrb[0].mxu0
      %1096 = vmatprep.mubr.f32.mxu0 0.0
      %1097 = vmatmul.mubr.f32.gmra.mrb[0].mxu0 %v957
      %v1098 = vpop.f32.mrb[0].mxu0
      %v1099 = vadd.f32 %v1005, %v1098
      %v1100 = vpop.f32.mrb[0].mxu0
      %1101 = vmatprep.mubr.f32.mxu0 0.0
      %1102 = vmatmul.mubr.f32.gmra.mrb[0].mxu0 %v958
      %v1103 = vpop.f32.mrb[0].mxu0
      %v1104 = vadd.f32 %v1005, %v1103
      %v1105 = vpop.f32.mrb[0].mxu0
      %1106 = vmatprep.mubr.f32.mxu0 0.0
      %1107 = vmatmul.mubr.f32.gmra.mrb[0].mxu0 %v959
      %v1108 = vpop.f32.mrb[0].mxu0
      %v1109 = vadd.f32 %v1005, %v1108
      %v1110 = vpop.f32.mrb[0].mxu0
      %1111 = vmatprep.mubr.f32.mxu0 0.0
      %1112 = vmatmul.mubr.f32.gmra.mrb[0].mxu0 %v960
      %v1113 = vpop.f32.mrb[0].mxu0
      %v1114 = vadd.f32 %v1005, %v1113
      %v1115 = vpop.f32.mrb[0].mxu0
      %1116 = vmatprep.mubr.f32.mxu0 0.0
      %1117 = vmatmul.mubr.f32.gmra.mrb[0].mxu0 %v961
      %v1118 = vpop.f32.mrb[0].mxu0
      %v1119 = vadd.f32 %v1005, %v1118
      %v1120 = vpop.f32.mrb[0].mxu0
      %1121 = vmatprep.mubr.f32.mxu0 0.0
      %1122 = vmatmul.mubr.f32.gmra.mrb[0].mxu0 %v962
      %v1123 = vpop.f32.mrb[0].mxu0
      %v1124 = vadd.f32 %v1005, %v1123
      %v1125 = vpop.f32.mrb[0].mxu0
      %1126 = vmatprep.mubr.f32.mxu0 0.0
      %1127 = vmatmul.mubr.f32.gmra.mrb[0].mxu0 %v963
      %v1128 = vpop.f32.mrb[0].mxu0
      %v1129 = vadd.f32 %v1005, %v1128
      %v1130 = vpop.f32.mrb[0].mxu0
      %1131 = vmatprep.mubr.f32.mxu0 0.0
      %1132 = vmatmul.mubr.f32.gmra.mrb[0].mxu0 %v964
      %v1133 = vpop.f32.mrb[0].mxu0
      %v1134 = vadd.f32 %v1005, %v1133
      %v1135 = vpop.f32.mrb[0].mxu0
      %1136 = vmatprep.mubr.f32.mxu0 0.0
      %1137 = vmatmul.mubr.f32.gmra.mrb[0].mxu0 %v965
      %v1138 = vpop.f32.mrb[0].mxu0
      %v1139 = vadd.f32 %v1005, %v1138
      %v1140 = vpop.f32.mrb[0].mxu0
      %1141 = vmatprep.mubr.f32.mxu0 0.0
      %1142 = vmatmul.mubr.f32.gmra.mrb[0].mxu0 %v966
      %v1143 = vpop.f32.mrb[0].mxu0
      %v1144 = vadd.f32 %v1005, %v1143
      %v1145 = vpop.f32.mrb[0].mxu0
      %1146 = vmatprep.mubr.f32.mxu0 0.0
      %1147 = vmatmul.mubr.f32.gmra.mrb[0].mxu0 %v967
      %v1148 = vpop.f32.mrb[0].mxu0
      %v1149 = vadd.f32 %v1005, %v1148
      %v1150 = vpop.f32.mrb[0].mxu0
      %1151 = vdwg.mxu0
      %1152 = vst [vmem:[%s436] sm:$0xff] %v1074
      %1153 = vst [vmem:[%s436 + $0x8] sm:$0xff] %v1079
      %1154 = vst [vmem:[%s436 + $0x10] sm:$0xff] %v1084
      %1155 = vst [vmem:[%s436 + $0x18] sm:$0xff] %v1089
      %1156 = vst [vmem:[%s436 + $0x20] sm:$0xff] %v1094
      %1157 = vst [vmem:[%s436 + $0x28] sm:$0xff] %v1099
      %1158 = vst [vmem:[%s436 + $0x30] sm:$0xff] %v1104
      %1159 = vst [vmem:[%s436 + $0x38] sm:$0xff] %v1109
      %1160 = vst [vmem:[%s436 + $0x40] sm:$0xff] %v1114
      %1161 = vst [vmem:[%s436 + $0x48] sm:$0xff] %v1119
      %1162 = vst [vmem:[%s436 + $0x50] sm:$0xff] %v1124
      %1163 = vst [vmem:[%s436 + $0x58] sm:$0xff] %v1129
      %1164 = vst [vmem:[%s436 + $0x60] sm:$0xff] %v1134
      %1165 = vst [vmem:[%s436 + $0x68] sm:$0xff] %v1139
      %1166 = vst [vmem:[%s436 + $0x70] sm:$0xff] %v1144
      %1167 = vst [vmem:[%s436 + $0x78] sm:$0xff] %v1149
      %v1168 = vlaneseq
      %v1169 = vand.u32 %v1168, 127
      %vm1170 = vcmp.lt.s32.totalorder %v1169, 8
      %v1171 = vsel %vm1170, %v1074, -1e+30
      %v1172 = vsel %vm1170, %v1079, -1e+30
      %v1173 = vsel %vm1170, %v1084, -1e+30
      %v1174 = vsel %vm1170, %v1089, -1e+30
      %v1175 = vsel %vm1170, %v1094, -1e+30
      %v1176 = vsel %vm1170, %v1099, -1e+30
      %v1177 = vsel %vm1170, %v1104, -1e+30
      %v1178 = vsel %vm1170, %v1109, -1e+30
      %v1179 = vsel %vm1170, %v1114, -1e+30
      %v1180 = vsel %vm1170, %v1119, -1e+30
      %v1181 = vsel %vm1170, %v1124, -1e+30
      %v1182 = vsel %vm1170, %v1129, -1e+30
      %v1183 = vsel %vm1170, %v1134, -1e+30
      %v1184 = vsel %vm1170, %v1139, -1e+30
      %v1185 = vsel %vm1170, %v1144, -1e+30
      %v1186 = vsel %vm1170, %v1149, -1e+30
      %1187 = vmax.xlane.f32.xlu0 %v1171
      %v1188 = vpop.xlane.xlu0 %1187
      %1189 = vmax.xlane.f32.xlu0 %v1172
      %v1190 = vpop.xlane.xlu0 %1189
      %1191 = vmax.xlane.f32.xlu0 %v1173
      %v1192 = vpop.xlane.xlu0 %1191
      %1193 = vmax.xlane.f32.xlu0 %v1174
      %v1194 = vpop.xlane.xlu0 %1193
      %1195 = vmax.xlane.f32.xlu0 %v1175
      %v1196 = vpop.xlane.xlu0 %1195
      %1197 = vmax.xlane.f32.xlu0 %v1176
      %v1198 = vpop.xlane.xlu0 %1197
      %1199 = vmax.xlane.f32.xlu0 %v1177
      %v1200 = vpop.xlane.xlu0 %1199
      %1201 = vmax.xlane.f32.xlu0 %v1178
      %v1202 = vpop.xlane.xlu0 %1201
      %1203 = vmax.xlane.f32.xlu0 %v1179
      %v1204 = vpop.xlane.xlu0 %1203
      %1205 = vmax.xlane.f32.xlu0 %v1180
      %v1206 = vpop.xlane.xlu0 %1205
      %1207 = vmax.xlane.f32.xlu0 %v1181
      %v1208 = vpop.xlane.xlu0 %1207
      %1209 = vmax.xlane.f32.xlu0 %v1182
      %v1210 = vpop.xlane.xlu0 %1209
      %1211 = vmax.xlane.f32.xlu0 %v1183
      %v1212 = vpop.xlane.xlu0 %1211
      %1213 = vmax.xlane.f32.xlu0 %v1184
      %v1214 = vpop.xlane.xlu0 %1213
      %1215 = vmax.xlane.f32.xlu0 %v1185
      %v1216 = vpop.xlane.xlu0 %1215
      %1217 = vmax.xlane.f32.xlu0 %v1186
      %v1218 = vpop.xlane.xlu0 %1217
      %v1219 = vsub.f32 %v1171, %v1188
      %v1220 = vsub.f32 %v1172, %v1190
      %v1221 = vsub.f32 %v1173, %v1192
      %v1222 = vsub.f32 %v1174, %v1194
      %v1223 = vsub.f32 %v1175, %v1196
      %v1224 = vsub.f32 %v1176, %v1198
      %v1225 = vsub.f32 %v1177, %v1200
      %v1226 = vsub.f32 %v1178, %v1202
      %v1227 = vsub.f32 %v1179, %v1204
      %v1228 = vsub.f32 %v1180, %v1206
      %v1229 = vsub.f32 %v1181, %v1208
      %v1230 = vsub.f32 %v1182, %v1210
      %v1231 = vsub.f32 %v1183, %v1212
      %v1232 = vsub.f32 %v1184, %v1214
      %v1233 = vsub.f32 %v1185, %v1216
      %v1234 = vsub.f32 %v1186, %v1218
      %v1235 = vmul.f32 %v1219, 1.442695
      %v1236 = vpow.pop %v1235
      %v1237 = vmul.f32 %v1220, 1.442695
      %v1238 = vpow.pop %v1237
      %v1239 = vmul.f32 %v1221, 1.442695
      %v1240 = vpow.pop %v1239
      %v1241 = vmul.f32 %v1222, 1.442695
      %v1242 = vpow.pop %v1241
      %v1243 = vmul.f32 %v1223, 1.442695
      %v1244 = vpow.pop %v1243
      %v1245 = vmul.f32 %v1224, 1.442695
      %v1246 = vpow.pop %v1245
      %v1247 = vmul.f32 %v1225, 1.442695
      %v1248 = vpow.pop %v1247
      %v1249 = vmul.f32 %v1226, 1.442695
      %v1250 = vpow.pop %v1249
      %v1251 = vmul.f32 %v1227, 1.442695
      %v1252 = vpow.pop %v1251
      %v1253 = vmul.f32 %v1228, 1.442695
      %v1254 = vpow.pop %v1253
      %v1255 = vmul.f32 %v1229, 1.442695
      %v1256 = vpow.pop %v1255
      %v1257 = vmul.f32 %v1230, 1.442695
      %v1258 = vpow.pop %v1257
      %v1259 = vmul.f32 %v1231, 1.442695
      %v1260 = vpow.pop %v1259
      %v1261 = vmul.f32 %v1232, 1.442695
      %v1262 = vpow.pop %v1261
      %v1263 = vmul.f32 %v1233, 1.442695
      %v1264 = vpow.pop %v1263
      %v1265 = vmul.f32 %v1234, 1.442695
      %v1266 = vpow.pop %v1265
      %1267 = vadd.xlane.f32.xlu0 %v1236
      %v1268 = vpop.xlane.xlu0 %1267
      %1269 = vadd.xlane.f32.xlu0 %v1238
      %v1270 = vpop.xlane.xlu0 %1269
      %1271 = vadd.xlane.f32.xlu0 %v1240
      %v1272 = vpop.xlane.xlu0 %1271
      %1273 = vadd.xlane.f32.xlu0 %v1242
      %v1274 = vpop.xlane.xlu0 %1273
      %1275 = vadd.xlane.f32.xlu0 %v1244
      %v1276 = vpop.xlane.xlu0 %1275
      %1277 = vadd.xlane.f32.xlu0 %v1246
      %v1278 = vpop.xlane.xlu0 %1277
      %1279 = vadd.xlane.f32.xlu0 %v1248
      %v1280 = vpop.xlane.xlu0 %1279
      %1281 = vadd.xlane.f32.xlu0 %v1250
      %v1282 = vpop.xlane.xlu0 %1281
      %1283 = vadd.xlane.f32.xlu0 %v1252
      %v1284 = vpop.xlane.xlu0 %1283
      %1285 = vadd.xlane.f32.xlu0 %v1254
      %v1286 = vpop.xlane.xlu0 %1285
      %1287 = vadd.xlane.f32.xlu0 %v1256
      %v1288 = vpop.xlane.xlu0 %1287
      %1289 = vadd.xlane.f32.xlu0 %v1258
      %v1290 = vpop.xlane.xlu0 %1289
      %1291 = vadd.xlane.f32.xlu0 %v1260
      %v1292 = vpop.xlane.xlu0 %1291
      %1293 = vadd.xlane.f32.xlu0 %v1262
      %v1294 = vpop.xlane.xlu0 %1293
      %1295 = vadd.xlane.f32.xlu0 %v1264
      %v1296 = vpop.xlane.xlu0 %1295
      %1297 = vadd.xlane.f32.xlu0 %v1266
      %v1298 = vpop.xlane.xlu0 %1297
      %v1299 = vlog2.pop %v1268
      %v1300 = vmul.f32 %v1299, 0.6931472
      %v1301 = vlog2.pop %v1270
      %v1302 = vmul.f32 %v1301, 0.6931472
      %v1303 = vlog2.pop %v1272
      %v1304 = vmul.f32 %v1303, 0.6931472
      %v1305 = vlog2.pop %v1274
      %v1306 = vmul.f32 %v1305, 0.6931472
      %v1307 = vlog2.pop %v1276
      %v1308 = vmul.f32 %v1307, 0.6931472
      %v1309 = vlog2.pop %v1278
      %v1310 = vmul.f32 %v1309, 0.6931472
      %v1311 = vlog2.pop %v1280
      %v1312 = vmul.f32 %v1311, 0.6931472
      %v1313 = vlog2.pop %v1282
      %v1314 = vmul.f32 %v1313, 0.6931472
      %v1315 = vlog2.pop %v1284
      %v1316 = vmul.f32 %v1315, 0.6931472
      %v1317 = vlog2.pop %v1286
      %v1318 = vmul.f32 %v1317, 0.6931472
      %v1319 = vlog2.pop %v1288
      %v1320 = vmul.f32 %v1319, 0.6931472
      %v1321 = vlog2.pop %v1290
      %v1322 = vmul.f32 %v1321, 0.6931472
      %v1323 = vlog2.pop %v1292
      %v1324 = vmul.f32 %v1323, 0.6931472
      %v1325 = vlog2.pop %v1294
      %v1326 = vmul.f32 %v1325, 0.6931472
      %v1327 = vlog2.pop %v1296
      %v1328 = vmul.f32 %v1327, 0.6931472
      %v1329 = vlog2.pop %v1298
      %v1330 = vmul.f32 %v1329, 0.6931472
      %v1331 = vadd.f32 %v1300, %v1188
      %v1332 = vadd.f32 %v1302, %v1190
      %v1333 = vadd.f32 %v1304, %v1192
      %v1334 = vadd.f32 %v1306, %v1194
      %v1335 = vadd.f32 %v1308, %v1196
      %v1336 = vadd.f32 %v1310, %v1198
      %v1337 = vadd.f32 %v1312, %v1200
      %v1338 = vadd.f32 %v1314, %v1202
      %v1339 = vadd.f32 %v1316, %v1204
      %v1340 = vadd.f32 %v1318, %v1206
      %v1341 = vadd.f32 %v1320, %v1208
      %v1342 = vadd.f32 %v1322, %v1210
      %v1343 = vadd.f32 %v1324, %v1212
      %v1344 = vadd.f32 %v1326, %v1214
      %v1345 = vadd.f32 %v1328, %v1216
      %v1346 = vadd.f32 %v1330, %v1218
      %v1347 = vsub.f32 %v1074, %v1331
      %v1348 = vsub.f32 %v1079, %v1332
      %v1349 = vsub.f32 %v1084, %v1333
      %v1350 = vsub.f32 %v1089, %v1334
      %v1351 = vsub.f32 %v1094, %v1335
      %v1352 = vsub.f32 %v1099, %v1336
      %v1353 = vsub.f32 %v1104, %v1337
      %v1354 = vsub.f32 %v1109, %v1338
      %v1355 = vsub.f32 %v1114, %v1339
      %v1356 = vsub.f32 %v1119, %v1340
      %v1357 = vsub.f32 %v1124, %v1341
      %v1358 = vsub.f32 %v1129, %v1342
      %v1359 = vsub.f32 %v1134, %v1343
      %v1360 = vsub.f32 %v1139, %v1344
      %v1361 = vsub.f32 %v1144, %v1345
      %v1362 = vsub.f32 %v1149, %v1346
      %1363 = vst [vmem:[%s442] sm:$0xff] %v1347
      %1364 = vst [vmem:[%s442 + $0x8] sm:$0xff] %v1348
      %1365 = vst [vmem:[%s442 + $0x10] sm:$0xff] %v1349
      %1366 = vst [vmem:[%s442 + $0x18] sm:$0xff] %v1350
      %1367 = vst [vmem:[%s442 + $0x20] sm:$0xff] %v1351
      %1368 = vst [vmem:[%s442 + $0x28] sm:$0xff] %v1352
      %1369 = vst [vmem:[%s442 + $0x30] sm:$0xff] %v1353
      %1370 = vst [vmem:[%s442 + $0x38] sm:$0xff] %v1354
      %1371 = vst [vmem:[%s442 + $0x40] sm:$0xff] %v1355
      %1372 = vst [vmem:[%s442 + $0x48] sm:$0xff] %v1356
      %1373 = vst [vmem:[%s442 + $0x50] sm:$0xff] %v1357
      %1374 = vst [vmem:[%s442 + $0x58] sm:$0xff] %v1358
      %1375 = vst [vmem:[%s442 + $0x60] sm:$0xff] %v1359
      %1376 = vst [vmem:[%s442 + $0x68] sm:$0xff] %v1360
      %1377 = vst [vmem:[%s442 + $0x70] sm:$0xff] %v1361
      %1378 = vst [vmem:[%s442 + $0x78] sm:$0xff] %v1362
      %s1379 = smul.u32 16, %s23
      %p1380 = scmp.lt.s32.totalorder %s1379, 31
      %s1381 = scalar_select %p1380, %s1379, 31
      %s1382 = smul.addr %s1381, 8
      %s1383 = scalar_lea.vmem %s6, %s1382
      %s1384 = smul.u32 16, %s23
      %p1385 = scmp.lt.s32.totalorder %s1384, 31
      %s1386 = scalar_select %p1385, %s1384, 31
      %s1387 = smul.addr %s1386, 8
      %s1388 = scalar_lea.vmem %s7, %s1387
      %s1389 = smul.u32 16, %s23
      %p1390 = scmp.lt.s32.totalorder %s1389, 31
      %s1391 = scalar_select %p1390, %s1389, 31
      %s1392 = smul.addr %s1391, 8
      %s1393 = scalar_lea.vmem %s8, %s1392
      %s1394 = smul.u32 16, %s23
      %p1395 = scmp.lt.s32.totalorder %s1394, 31
      %s1396 = scalar_select %p1395, %s1394, 31
      %s1397 = smul.addr %s1396, 8
      %s1398 = scalar_lea.vmem %s9, %s1397
      %s1399 = smul.u32 16, %s23
      %p1400 = scmp.lt.s32.totalorder %s1399, 31
      %s1401 = scalar_select %p1400, %s1399, 31
      %s1402 = smul.addr %s1401, 8
      %s1403 = scalar_lea.vmem %s10, %s1402
      %s1404 = smul.u32 16, %s23
      %p1405 = scmp.lt.s32.totalorder %s1404, 31
      %s1406 = scalar_select %p1405, %s1404, 31
      %s1407 = smul.addr %s1406, 8
      %s1408 = scalar_lea.vmem %s11, %s1407
      // Predicated region
      $region45: #{dnn_forward.1} parent=43 // pred_check
        %p1409 = pneg %p172
      $region46: #{dnn_forward.1} parent=43 // pred_check_branch
        %1411 = sbr.rel (%p1409) target = $region48
      $region47: #{dnn_forward.1} parent=43 // pred_region
        %s1412 = smul.u32 16, %s23
      $region48: #{dnn_forward.1} parent=43 // pred_fallthru
        _
      // Predicated region
      $region49: #{dnn_forward.1} parent=43 // pred_check
        %p1413 = pneg %p198
      $region50: #{dnn_forward.1} parent=43 // pred_check_branch
        %1415 = sbr.rel (%p1413) target = $region52
      $region51: #{dnn_forward.1} parent=43 // pred_region
        %s1416 = smul.u32 16, %s23
      $region52: #{dnn_forward.1} parent=43 // pred_fallthru
        _
      // Predicated region
      $region53: #{dnn_forward.1} parent=43 // pred_check
        %p1417 = pneg %p224
      $region54: #{dnn_forward.1} parent=43 // pred_check_branch
        %1419 = sbr.rel (%p1417) target = $region56
      $region55: #{dnn_forward.1} parent=43 // pred_region
        %s1420 = smul.u32 16, %s23
      $region56: #{dnn_forward.1} parent=43 // pred_fallthru
        _
      // Predicated region
      $region57: #{dnn_forward.1} parent=43 // pred_check
        %p1421 = pneg %p250
      $region58: #{dnn_forward.1} parent=43 // pred_check_branch
        %1423 = sbr.rel (%p1421) target = $region60
      $region59: #{dnn_forward.1} parent=43 // pred_region
        %s1424 = smul.u32 16, %s23
      $region60: #{dnn_forward.1} parent=43 // pred_fallthru
        _
      // Predicated region
      $region61: #{dnn_forward.1} parent=43 // pred_check
        %p1425 = pneg %p276
      $region62: #{dnn_forward.1} parent=43 // pred_check_branch
        %1427 = sbr.rel (%p1425) target = $region64
      $region63: #{dnn_forward.1} parent=43 // pred_region
        %s1428 = smul.u32 16, %s23
      $region64: #{dnn_forward.1} parent=43 // pred_fallthru
        _
      // Predicated region
      $region65: #{dnn_forward.1} parent=43 // pred_check
        %p1429 = pneg %p302
      $region66: #{dnn_forward.1} parent=43 // pred_check_branch
        %1431 = sbr.rel (%p1429) target = $region68
      $region67: #{dnn_forward.1} parent=43 // pred_region
        %s1432 = smul.u32 16, %s23
      $region68: #{dnn_forward.1} parent=43 // pred_fallthru
        _
    $region44: #{dnn_forward.1} parent=5 // pred_fallthru
      _
    %p1433 = scmp.le.s32.totalorder 2, %s18
    // Predicated region
    $region69: #{dnn_forward.1} parent=5 // pred_check
      %p1434 = pneg %p1433
    $region70: #{dnn_forward.1} parent=5 // pred_check_branch
      %1436 = sbr.rel (%p1434) target = $region72
    $region71: #{dnn_forward.1} parent=5 // pred_region
      %s1437 = ssub.s32 %s18, 2
      // Predicated region
      $region73: #{dnn_forward.1} parent=71 // pred_check
        %p1438 = pneg %p178
      $region74: #{dnn_forward.1} parent=71 // pred_check_branch
        %1440 = sbr.rel (%p1438) target = $region76
      $region75: #{dnn_forward.1} parent=71 // pred_region
        %s1441 = smul.u32 16, %s24
        %p1442 = scmp.lt.s32.totalorder %s1441, 31
        %s1443 = scalar_select %p1442, %s1441, 31
        %s1444 = smul.addr %s1443, 8
        %s1445 = scalar_lea.vmem %s6, %s1444
      $region76: #{dnn_forward.1} parent=71 // pred_fallthru
        _
      // Predicated region
      $region77: #{dnn_forward.1} parent=71 // pred_check
        %p1446 = pneg %p204
      $region78: #{dnn_forward.1} parent=71 // pred_check_branch
        %1448 = sbr.rel (%p1446) target = $region80
      $region79: #{dnn_forward.1} parent=71 // pred_region
        %s1449 = smul.u32 16, %s24
        %p1450 = scmp.lt.s32.totalorder %s1449, 31
        %s1451 = scalar_select %p1450, %s1449, 31
        %s1452 = smul.addr %s1451, 8
        %s1453 = scalar_lea.vmem %s7, %s1452
      $region80: #{dnn_forward.1} parent=71 // pred_fallthru
        _
      // Predicated region
      $region81: #{dnn_forward.1} parent=71 // pred_check
        %p1454 = pneg %p230
      $region82: #{dnn_forward.1} parent=71 // pred_check_branch
        %1456 = sbr.rel (%p1454) target = $region84
      $region83: #{dnn_forward.1} parent=71 // pred_region
        %s1457 = smul.u32 16, %s24
        %p1458 = scmp.lt.s32.totalorder %s1457, 31
        %s1459 = scalar_select %p1458, %s1457, 31
        %s1460 = smul.addr %s1459, 8
        %s1461 = scalar_lea.vmem %s8, %s1460
      $region84: #{dnn_forward.1} parent=71 // pred_fallthru
        _
      // Predicated region
      $region85: #{dnn_forward.1} parent=71 // pred_check
        %p1462 = pneg %p256
      $region86: #{dnn_forward.1} parent=71 // pred_check_branch
        %1464 = sbr.rel (%p1462) target = $region88
      $region87: #{dnn_forward.1} parent=71 // pred_region
        %s1465 = smul.u32 16, %s24
        %p1466 = scmp.lt.s32.totalorder %s1465, 31
        %s1467 = scalar_select %p1466, %s1465, 31
        %s1468 = smul.addr %s1467, 8
        %s1469 = scalar_lea.vmem %s9, %s1468
      $region88: #{dnn_forward.1} parent=71 // pred_fallthru
        _
      // Predicated region
      $region89: #{dnn_forward.1} parent=71 // pred_check
        %p1470 = pneg %p282
      $region90: #{dnn_forward.1} parent=71 // pred_check_branch
        %1472 = sbr.rel (%p1470) target = $region92
      $region91: #{dnn_forward.1} parent=71 // pred_region
        %s1473 = smul.u32 16, %s24
        %p1474 = scmp.lt.s32.totalorder %s1473, 31
        %s1475 = scalar_select %p1474, %s1473, 31
        %s1476 = smul.addr %s1475, 8
        %s1477 = scalar_lea.vmem %s10, %s1476
      $region92: #{dnn_forward.1} parent=71 // pred_fallthru
        _
      // Predicated region
      $region93: #{dnn_forward.1} parent=71 // pred_check
        %p1478 = pneg %p308
      $region94: #{dnn_forward.1} parent=71 // pred_check_branch
        %1480 = sbr.rel (%p1478) target = $region96
      $region95: #{dnn_forward.1} parent=71 // pred_region
        %s1481 = smul.u32 16, %s24
        %p1482 = scmp.lt.s32.totalorder %s1481, 31
        %s1483 = scalar_select %p1482, %s1481, 31
        %s1484 = smul.addr %s1483, 8
        %s1485 = scalar_lea.vmem %s11, %s1484
      $region96: #{dnn_forward.1} parent=71 // pred_fallthru
        _
    $region72: #{dnn_forward.1} parent=5 // pred_fallthru
      _
  $region6: #{dnn_forward.1} parent=0 // loop_footer
    %s22 = sadd.s32 1, %s18
  $region7: #{dnn_forward.1} parent=0 // loop_footer_branch
    %17 = sbr.rel target = $region3
  $region8: #{dnn_forward.1} parent=0 // loop_exit
    _

</llo_original>
